<compile_context>
chip_gen: v7x
topology: tpu7x:2x2x1
jax: 0.10.0
libtpu: 0.0.40
codegen_flags: <defaults>
</compile_context>

<pallas_src>
import math

import jax
import jax.numpy as jnp
from jax.experimental import pallas as pl
from jax.experimental.pallas import tpu as pltpu  # noqa: F401  (kept for TPU-specific tuning hooks)

# ---------------- model hyperparameters (small, consistent with the module) ----------------
B = 2          # batch
S = 8          # sequence length
E = 32         # embed_dim
H = 4          # num_heads
HEAD_DIM = E // H
FF = 4 * E     # feed-forward hidden dim
EPS = 1e-5     # nn.LayerNorm default eps


def _layernorm(x, gamma, beta):
    mu = jnp.mean(x, axis=-1, keepdims=True)
    var = jnp.mean((x - mu) ** 2, axis=-1, keepdims=True)
    return (x - mu) * jax.lax.rsqrt(var + EPS) * gamma + beta


def attention_block_kernel(
    x_ref,              # (B, S, E)
    wqkv_ref,           # (H*B, E, 3*Dh)  fused per-(head,batch) QKV weight, (in,out), Q pre-scaled
    bqkv_ref,           # (H*B, 1, 3*Dh)  fused per-(head,batch) QKV bias,   Q pre-scaled
    wo_ref,             # (H*B, Dh, E)    per-head rows of Wo^T
    bo_ref,             # (1, E)
    g1_ref, be1_ref,    # (1, E) each     norm1
    w1_ref, b1_ref,     # (E, FF), (1, FF)  ff linear1 (pre-transposed)
    w2_ref, b2_ref,     # (FF, E), (1, E)   ff linear2 (pre-transposed)
    g2_ref, be2_ref,    # (1, E) each     norm2
    o_ref,              # (B, S, E)
):
    Bx, Sx, Ex = x_ref.shape
    T = Bx * Sx
    G = H * Bx
    Dh = Ex // H

    x = x_ref[...].astype(jnp.float32)            # (B, S, E)
    x2 = x.reshape(T, Ex)                         # (T, E) residual path (leading-dim merge only)

    # --- fused Q/K/V projection, batched over g = head*B + batch (no in-kernel transposes) ---
    xg = jnp.broadcast_to(x[None], (H, Bx, Sx, Ex)).reshape(G, Sx, Ex)
    qkv = jnp.einsum("gse,gef->gsf", xg, wqkv_ref[...],
                     preferred_element_type=jnp.float32) + bqkv_ref[...]    # (G, S, 3*Dh)
    q = qkv[:, :, :Dh]                            # 1/sqrt(Dh) already folded into Q weights/bias
    k = qkv[:, :, Dh:2 * Dh]
    v = qkv[:, :, 2 * Dh:]

    # --- scores + softmax, batched over (head, batch); contracts last dims (no k.T) ---
    s = jnp.einsum("gqd,gkd->gqk", q, k, preferred_element_type=jnp.float32)   # (G, S, S)
    s = s - jnp.max(s, axis=-1, keepdims=True)
    p = jnp.exp(s)
    p = p * pl.reciprocal(jnp.sum(p, axis=-1, keepdims=True), approx=True)
    o = jnp.einsum("gqk,gkd->gqd", p, v, preferred_element_type=jnp.float32)   # (G, S, Dh)

    # --- per-head output projection, then sum over heads (replaces concat + @ Wo^T) ---
    attn_g = jnp.einsum("gqd,gde->gqe", o, wo_ref[...],
                        preferred_element_type=jnp.float32)                    # (G, S, E)
    attn = attn_g.reshape(H, Bx, Sx, Ex).sum(axis=0).reshape(T, Ex) + bo_ref[...]

    # --- residual + LayerNorm 1 (dropout1 = identity in eval) ---
    h1 = _layernorm(x2 + attn, g1_ref[...], be1_ref[...])

    # --- feed-forward: Linear(E,4E) -> ReLU -> Linear(4E,E) (dropout = identity) ---
    ff = jnp.dot(h1, w1_ref[...], preferred_element_type=jnp.float32) + b1_ref[...]
    ff = jnp.maximum(ff, 0.0)
    ff = jnp.dot(ff, w2_ref[...], preferred_element_type=jnp.float32) + b2_ref[...]

    # --- residual + LayerNorm 2 (dropout2 = identity in eval) ---
    out = _layernorm(h1 + ff, g2_ref[...], be2_ref[...])
    o_ref[...] = out.reshape(Bx, Sx, Ex).astype(o_ref.dtype)


def _prepare_weights(p, batch):
    """Wrapper-side layout plumbing (free for the kernel):
    pre-transpose every weight to (in, out), fuse Q/K/V per head, fold 1/sqrt(Dh) into the
    Q projection, and tile per-(head, batch) so the kernel needs zero relayouts."""
    scale = 1.0 / math.sqrt(HEAD_DIM)

    def per_head_cols(w_t):                       # (E_in, E_out) -> (H, E_in, Dh)
        return w_t.reshape(E, H, HEAD_DIM).transpose(1, 0, 2)

    wqkv_h = jnp.concatenate(
        [per_head_cols((p["wq"] * scale).T),
         per_head_cols(p["wk"].T),
         per_head_cols(p["wv"].T)], axis=-1)                       # (H, E, 3*Dh)
    bqkv_h = jnp.concatenate(
        [(p["bq"][0] * scale).reshape(H, 1, HEAD_DIM),
         p["bk"][0].reshape(H, 1, HEAD_DIM),
         p["bv"][0].reshape(H, 1, HEAD_DIM)], axis=-1)             # (H, 1, 3*Dh)
    wo_h = p["wo"].T.reshape(H, HEAD_DIM, E)                       # (H, Dh, E)

    def tile_b(a):                                # (H, ...) -> (H*batch, ...), g = h*batch + b
        return jnp.broadcast_to(a[:, None], (H, batch) + a.shape[1:]
                                ).reshape((H * batch,) + a.shape[1:])

    return (tile_b(wqkv_h), tile_b(bqkv_h), tile_b(wo_h), p["bo"],
            p["g1"], p["be1"],
            p["w1"].T, p["b1"], p["w2"].T, p["b2"],
            p["g2"], p["be2"])


def attention_block(x, params):
    """x: (B, S, E) float32. params: PyTorch-layout weights (see init_params)."""
    Bx, Sx, Ex = x.shape
    assert (Sx, Ex) == (S, E) and Ex % H == 0
    prepared = _prepare_weights(params, Bx)
    # Single invocation, no grid: whole problem + all weights resident in VMEM once.
    return pl.pallas_call(
        attention_block_kernel,
        out_shape=jax.ShapeDtypeStruct((Bx, Sx, Ex), x.dtype),
    )(x, *prepared)


def init_params(key):
    ks = jax.random.split(key, 10)
    scale = 0.05
    return {
        # MultiheadAttention in_proj split into q/k/v (PyTorch layout: (out, in))
        "wq": jax.random.normal(ks[0], (E, E), jnp.float32) * scale,
        "wk": jax.random.normal(ks[1], (E, E), jnp.float32) * scale,
        "wv": jax.random.normal(ks[2], (E, E), jnp.float32) * scale,
        "bq": jax.random.normal(ks[3], (1, E), jnp.float32) * scale,
        "bk": jax.random.normal(ks[4], (1, E), jnp.float32) * scale,
        "bv": jax.random.normal(ks[5], (1, E), jnp.float32) * scale,
        # out_proj
        "wo": jax.random.normal(ks[6], (E, E), jnp.float32) * scale,
        "bo": jnp.zeros((1, E), jnp.float32),
        # norm1
        "g1": jnp.ones((1, E), jnp.float32),
        "be1": jnp.zeros((1, E), jnp.float32),
        # feed-forward
        "w1": jax.random.normal(ks[7], (FF, E), jnp.float32) * scale,
        "b1": jax.random.normal(ks[8], (1, FF), jnp.float32) * scale,
        "w2": jax.random.normal(ks[9], (E, FF), jnp.float32) * scale,
        "b2": jnp.zeros((1, E), jnp.float32),
        # norm2
        "g2": jnp.ones((1, E), jnp.float32),
        "be2": jnp.zeros((1, E), jnp.float32),
    }


def reference(x, p):
    """Pure-JAX reference matching nn.MultiheadAttention(batch_first=True) eval forward."""
    def one(xb):
        q = xb @ p["wq"].T + p["bq"]
        k = xb @ p["wk"].T + p["bk"]
        v = xb @ p["wv"].T + p["bv"]
        outs = []
        for h in range(H):
            sl = slice(h * HEAD_DIM, (h + 1) * HEAD_DIM)
            s = (q[:, sl] @ k[:, sl].T) / math.sqrt(HEAD_DIM)
            pmat = jax.nn.softmax(s, axis=-1)
            outs.append(pmat @ v[:, sl])
        attn = jnp.concatenate(outs, axis=-1) @ p["wo"].T + p["bo"]
        h1 = _layernorm(xb + attn, p["g1"], p["be1"])
        ff = jnp.maximum(h1 @ p["w1"].T + p["b1"], 0.0) @ p["w2"].T + p["b2"]
        return _layernorm(h1 + ff, p["g2"], p["be2"])
    return jax.vmap(one)(x)


if __name__ == "__main__":
    key = jax.random.PRNGKey(0)
    kx, kp = jax.random.split(key)
    x = jax.random.normal(kx, (B, S, E), jnp.float32)
    params = init_params(kp)

    out = jax.block_until_ready(attention_block(x, params))
    ref = reference(x, params)

    assert out.shape == (B, S, E)
    err = float(jnp.max(jnp.abs(out - ref)))
    # 2e-3 tolerance: approx=True softmax reciprocal (EUP vrcp) carries ~1e-4..1e-3 rel error.
    assert err < 2e-3, f"max abs diff vs reference: {err}"
    print("KERNEL_OK")
</pallas_src>

<mosaic_0001>
module attributes {stable_mosaic.version = 11 : i64} {
  func.func @attention_block_kernel(%arg0: memref<2x8x32xf32, #tpu.memory_space<vmem>>, %arg1: memref<8x32x24xf32, #tpu.memory_space<vmem>>, %arg2: memref<8x1x24xf32, #tpu.memory_space<vmem>>, %arg3: memref<8x8x32xf32, #tpu.memory_space<vmem>>, %arg4: memref<1x32xf32, #tpu.memory_space<vmem>>, %arg5: memref<1x32xf32, #tpu.memory_space<vmem>>, %arg6: memref<1x32xf32, #tpu.memory_space<vmem>>, %arg7: memref<32x128xf32, #tpu.memory_space<vmem>>, %arg8: memref<1x128xf32, #tpu.memory_space<vmem>>, %arg9: memref<128x32xf32, #tpu.memory_space<vmem>>, %arg10: memref<1x32xf32, #tpu.memory_space<vmem>>, %arg11: memref<1x32xf32, #tpu.memory_space<vmem>>, %arg12: memref<1x32xf32, #tpu.memory_space<vmem>>, %arg13: memref<2x8x32xf32, #tpu.memory_space<vmem>>) attributes {dimension_semantics = [], scalar_prefetch = 0 : i64, scratch_operands = 0 : i64, tpu.core_type = #tpu.core_type<tc>} {
    %c0 = arith.constant 0 : index
    %c0_0 = arith.constant 0 : index
    %c0_1 = arith.constant 0 : index
    %0 = vector.load %arg0[%c0, %c0_0, %c0_1] : memref<2x8x32xf32, #tpu.memory_space<vmem>>, vector<2x8x32xf32>
    %1 = vector.shape_cast %0 : vector<2x8x32xf32> to vector<16x32xf32>
    %2 = vector.shape_cast %0 : vector<2x8x32xf32> to vector<1x2x8x32xf32>
    %3 = vector.shape_cast %2 : vector<1x2x8x32xf32> to vector<1x2x8x32xf32>
    %4 = vector.broadcast %3 : vector<1x2x8x32xf32> to vector<4x2x8x32xf32>
    %5 = vector.shape_cast %4 : vector<4x2x8x32xf32> to vector<8x8x32xf32>
    %c0_2 = arith.constant 0 : index
    %c0_3 = arith.constant 0 : index
    %c0_4 = arith.constant 0 : index
    %6 = vector.load %arg1[%c0_2, %c0_3, %c0_4] : memref<8x32x24xf32, #tpu.memory_space<vmem>>, vector<8x32x24xf32>
    "tpu.trace_start"() <{level = 10 : i32, message = "gse,gef->gsf"}> : () -> ()
    %cst = arith.constant dense<0.000000e+00> : vector<8x8x24xf32>
    %7 = tpu.matmul %5, %6, %cst {dimension_numbers = #tpu.dot_dimension_numbers<[2], [1], [1], [2], [0, 0, 0, 1, 1, 2], [0], [0]>} : vector<8x8x32xf32>, vector<8x32x24xf32>, vector<8x8x24xf32> -> vector<8x8x24xf32>
    "tpu.trace_stop"() : () -> ()
    %c0_5 = arith.constant 0 : index
    %c0_6 = arith.constant 0 : index
    %c0_7 = arith.constant 0 : index
    %8 = vector.load %arg2[%c0_5, %c0_6, %c0_7] : memref<8x1x24xf32, #tpu.memory_space<vmem>>, vector<8x1x24xf32>
    %9 = vector.broadcast %8 : vector<8x1x24xf32> to vector<8x8x24xf32>
    %10 = arith.addf %7, %9 : vector<8x8x24xf32>
    %11 = vector.extract_strided_slice %10 {offsets = [0, 0, 0], sizes = [8, 8, 8], strides = [1, 1, 1]} : vector<8x8x24xf32> to vector<8x8x8xf32>
    %12 = vector.extract_strided_slice %10 {offsets = [0, 0, 8], sizes = [8, 8, 8], strides = [1, 1, 1]} : vector<8x8x24xf32> to vector<8x8x8xf32>
    %13 = vector.extract_strided_slice %10 {offsets = [0, 0, 16], sizes = [8, 8, 8], strides = [1, 1, 1]} : vector<8x8x24xf32> to vector<8x8x8xf32>
    "tpu.trace_start"() <{level = 10 : i32, message = "gqd,gkd->gqk"}> : () -> ()
    %cst_8 = arith.constant dense<0.000000e+00> : vector<8x8x8xf32>
    %14 = tpu.matmul %11, %12, %cst_8 {dimension_numbers = #tpu.dot_dimension_numbers<[2], [2], [1], [1], [0, 0, 0, 1, 1, 1], [0], [0]>} : vector<8x8x8xf32>, vector<8x8x8xf32>, vector<8x8x8xf32> -> vector<8x8x8xf32>
    "tpu.trace_stop"() : () -> ()
    %cst_9 = arith.constant dense<0xFF800000> : vector<8x8xf32>
    %15 = vector.multi_reduction <maximumf>, %14, %cst_9 [2] : vector<8x8x8xf32> to vector<8x8xf32>
    %16 = vector.shape_cast %15 : vector<8x8xf32> to vector<8x8x1xf32>
    %17 = vector.broadcast %16 : vector<8x8x1xf32> to vector<8x8x8xf32>
    %18 = arith.subf %14, %17 : vector<8x8x8xf32>
    %19 = math.exp %18 : vector<8x8x8xf32>
    %cst_10 = arith.constant dense<0.000000e+00> : vector<8x8xf32>
    %20 = vector.multi_reduction <add>, %19, %cst_10 [2] : vector<8x8x8xf32> to vector<8x8xf32>
    %21 = vector.shape_cast %20 : vector<8x8xf32> to vector<8x8x1xf32>
    %22 = tpu.reciprocal %21 {approx = true} : vector<8x8x1xf32> -> vector<8x8x1xf32>
    %23 = vector.broadcast %22 : vector<8x8x1xf32> to vector<8x8x8xf32>
    %24 = arith.mulf %19, %23 : vector<8x8x8xf32>
    "tpu.trace_start"() <{level = 10 : i32, message = "gqk,gkd->gqd"}> : () -> ()
    %cst_11 = arith.constant dense<0.000000e+00> : vector<8x8x8xf32>
    %25 = tpu.matmul %24, %13, %cst_11 {dimension_numbers = #tpu.dot_dimension_numbers<[2], [1], [1], [2], [0, 0, 0, 1, 1, 2], [0], [0]>} : vector<8x8x8xf32>, vector<8x8x8xf32>, vector<8x8x8xf32> -> vector<8x8x8xf32>
    "tpu.trace_stop"() : () -> ()
    %c0_12 = arith.constant 0 : index
    %c0_13 = arith.constant 0 : index
    %c0_14 = arith.constant 0 : index
    %26 = vector.load %arg3[%c0_12, %c0_13, %c0_14] : memref<8x8x32xf32, #tpu.memory_space<vmem>>, vector<8x8x32xf32>
    "tpu.trace_start"() <{level = 10 : i32, message = "gqd,gde->gqe"}> : () -> ()
    %cst_15 = arith.constant dense<0.000000e+00> : vector<8x8x32xf32>
    %27 = tpu.matmul %25, %26, %cst_15 {dimension_numbers = #tpu.dot_dimension_numbers<[2], [1], [1], [2], [0, 0, 0, 1, 1, 2], [0], [0]>} : vector<8x8x8xf32>, vector<8x8x32xf32>, vector<8x8x32xf32> -> vector<8x8x32xf32>
    "tpu.trace_stop"() : () -> ()
    %28 = vector.shape_cast %27 : vector<8x8x32xf32> to vector<4x2x8x32xf32>
    %cst_16 = arith.constant dense<0.000000e+00> : vector<2x8x32xf32>
    %29 = vector.multi_reduction <add>, %28, %cst_16 [0] : vector<4x2x8x32xf32> to vector<2x8x32xf32>
    %30 = vector.shape_cast %29 : vector<2x8x32xf32> to vector<16x32xf32>
    %c0_17 = arith.constant 0 : index
    %c0_18 = arith.constant 0 : index
    %31 = vector.load %arg4[%c0_17, %c0_18] : memref<1x32xf32, #tpu.memory_space<vmem>>, vector<1x32xf32>
    %32 = vector.broadcast %31 : vector<1x32xf32> to vector<16x32xf32>
    %33 = arith.addf %30, %32 : vector<16x32xf32>
    %34 = arith.addf %1, %33 : vector<16x32xf32>
    %c0_19 = arith.constant 0 : index
    %c0_20 = arith.constant 0 : index
    %35 = vector.load %arg5[%c0_19, %c0_20] : memref<1x32xf32, #tpu.memory_space<vmem>>, vector<1x32xf32>
    %c0_21 = arith.constant 0 : index
    %c0_22 = arith.constant 0 : index
    %36 = vector.load %arg6[%c0_21, %c0_22] : memref<1x32xf32, #tpu.memory_space<vmem>>, vector<1x32xf32>
    %cst_23 = arith.constant dense<0.000000e+00> : vector<16xf32>
    %37 = vector.multi_reduction <add>, %34, %cst_23 [1] : vector<16x32xf32> to vector<16xf32>
    %38 = vector.shape_cast %37 : vector<16xf32> to vector<16x1xf32>
    %cst_24 = arith.constant 3.200000e+01 : f32
    %39 = vector.broadcast %cst_24 : f32 to vector<16x1xf32>
    %40 = arith.divf %38, %39 : vector<16x1xf32>
    %41 = vector.broadcast %40 : vector<16x1xf32> to vector<16x32xf32>
    %42 = arith.subf %34, %41 : vector<16x32xf32>
    %43 = arith.mulf %42, %42 : vector<16x32xf32>
    %cst_25 = arith.constant dense<0.000000e+00> : vector<16xf32>
    %44 = vector.multi_reduction <add>, %43, %cst_25 [1] : vector<16x32xf32> to vector<16xf32>
    %45 = vector.shape_cast %44 : vector<16xf32> to vector<16x1xf32>
    %cst_26 = arith.constant 3.200000e+01 : f32
    %46 = vector.broadcast %cst_26 : f32 to vector<16x1xf32>
    %47 = arith.divf %45, %46 : vector<16x1xf32>
    %48 = vector.broadcast %40 : vector<16x1xf32> to vector<16x32xf32>
    %49 = arith.subf %34, %48 : vector<16x32xf32>
    %cst_27 = arith.constant 9.99999974E-6 : f32
    %50 = vector.broadcast %cst_27 : f32 to vector<16x1xf32>
    %51 = arith.addf %47, %50 : vector<16x1xf32>
    %52 = math.rsqrt %51 : vector<16x1xf32>
    %53 = vector.broadcast %52 : vector<16x1xf32> to vector<16x32xf32>
    %54 = arith.mulf %49, %53 : vector<16x32xf32>
    %55 = vector.broadcast %35 : vector<1x32xf32> to vector<16x32xf32>
    %56 = arith.mulf %54, %55 : vector<16x32xf32>
    %57 = vector.broadcast %36 : vector<1x32xf32> to vector<16x32xf32>
    %58 = arith.addf %56, %57 : vector<16x32xf32>
    %c0_28 = arith.constant 0 : index
    %c0_29 = arith.constant 0 : index
    %59 = vector.load %arg7[%c0_28, %c0_29] : memref<32x128xf32, #tpu.memory_space<vmem>>, vector<32x128xf32>
    %cst_30 = arith.constant dense<0.000000e+00> : vector<16x128xf32>
    %60 = tpu.matmul %58, %59, %cst_30 {dimension_numbers = #tpu.dot_dimension_numbers<[1], [0], [0], [1], [0, 0, 1, 1], [], []>} : vector<16x32xf32>, vector<32x128xf32>, vector<16x128xf32> -> vector<16x128xf32>
    %c0_31 = arith.constant 0 : index
    %c0_32 = arith.constant 0 : index
    %61 = vector.load %arg8[%c0_31, %c0_32] : memref<1x128xf32, #tpu.memory_space<vmem>>, vector<1x128xf32>
    %62 = vector.broadcast %61 : vector<1x128xf32> to vector<16x128xf32>
    %63 = arith.addf %60, %62 : vector<16x128xf32>
    %cst_33 = arith.constant 0.000000e+00 : f32
    %64 = vector.broadcast %cst_33 : f32 to vector<16x128xf32>
    %65 = arith.maximumf %63, %64 : vector<16x128xf32>
    %c0_34 = arith.constant 0 : index
    %c0_35 = arith.constant 0 : index
    %66 = vector.load %arg9[%c0_34, %c0_35] : memref<128x32xf32, #tpu.memory_space<vmem>>, vector<128x32xf32>
    %cst_36 = arith.constant dense<0.000000e+00> : vector<16x32xf32>
    %67 = tpu.matmul %65, %66, %cst_36 {dimension_numbers = #tpu.dot_dimension_numbers<[1], [0], [0], [1], [0, 0, 1, 1], [], []>} : vector<16x128xf32>, vector<128x32xf32>, vector<16x32xf32> -> vector<16x32xf32>
    %c0_37 = arith.constant 0 : index
    %c0_38 = arith.constant 0 : index
    %68 = vector.load %arg10[%c0_37, %c0_38] : memref<1x32xf32, #tpu.memory_space<vmem>>, vector<1x32xf32>
    %69 = vector.broadcast %68 : vector<1x32xf32> to vector<16x32xf32>
    %70 = arith.addf %67, %69 : vector<16x32xf32>
    %71 = arith.addf %58, %70 : vector<16x32xf32>
    %c0_39 = arith.constant 0 : index
    %c0_40 = arith.constant 0 : index
    %72 = vector.load %arg11[%c0_39, %c0_40] : memref<1x32xf32, #tpu.memory_space<vmem>>, vector<1x32xf32>
    %c0_41 = arith.constant 0 : index
    %c0_42 = arith.constant 0 : index
    %73 = vector.load %arg12[%c0_41, %c0_42] : memref<1x32xf32, #tpu.memory_space<vmem>>, vector<1x32xf32>
    %cst_43 = arith.constant dense<0.000000e+00> : vector<16xf32>
    %74 = vector.multi_reduction <add>, %71, %cst_43 [1] : vector<16x32xf32> to vector<16xf32>
    %75 = vector.shape_cast %74 : vector<16xf32> to vector<16x1xf32>
    %cst_44 = arith.constant 3.200000e+01 : f32
    %76 = vector.broadcast %cst_44 : f32 to vector<16x1xf32>
    %77 = arith.divf %75, %76 : vector<16x1xf32>
    %78 = vector.broadcast %77 : vector<16x1xf32> to vector<16x32xf32>
    %79 = arith.subf %71, %78 : vector<16x32xf32>
    %80 = arith.mulf %79, %79 : vector<16x32xf32>
    %cst_45 = arith.constant dense<0.000000e+00> : vector<16xf32>
    %81 = vector.multi_reduction <add>, %80, %cst_45 [1] : vector<16x32xf32> to vector<16xf32>
    %82 = vector.shape_cast %81 : vector<16xf32> to vector<16x1xf32>
    %cst_46 = arith.constant 3.200000e+01 : f32
    %83 = vector.broadcast %cst_46 : f32 to vector<16x1xf32>
    %84 = arith.divf %82, %83 : vector<16x1xf32>
    %85 = vector.broadcast %77 : vector<16x1xf32> to vector<16x32xf32>
    %86 = arith.subf %71, %85 : vector<16x32xf32>
    %cst_47 = arith.constant 9.99999974E-6 : f32
    %87 = vector.broadcast %cst_47 : f32 to vector<16x1xf32>
    %88 = arith.addf %84, %87 : vector<16x1xf32>
    %89 = math.rsqrt %88 : vector<16x1xf32>
    %90 = vector.broadcast %89 : vector<16x1xf32> to vector<16x32xf32>
    %91 = arith.mulf %86, %90 : vector<16x32xf32>
    %92 = vector.broadcast %72 : vector<1x32xf32> to vector<16x32xf32>
    %93 = arith.mulf %91, %92 : vector<16x32xf32>
    %94 = vector.broadcast %73 : vector<1x32xf32> to vector<16x32xf32>
    %95 = arith.addf %93, %94 : vector<16x32xf32>
    %96 = vector.shape_cast %95 : vector<16x32xf32> to vector<2x8x32xf32>
    %c0_48 = arith.constant 0 : index
    %c0_49 = arith.constant 0 : index
    %c0_50 = arith.constant 0 : index
    %97 = vector.load %arg13[%c0_48, %c0_49, %c0_50] : memref<2x8x32xf32, #tpu.memory_space<vmem>>, vector<2x8x32xf32>
    tpu.vector_store %arg13[%c0_48, %c0_49, %c0_50], %96 {strides = array<i32>} : memref<2x8x32xf32, #tpu.memory_space<vmem>>, vector<2x8x32xf32>,
    return
  }
}

</mosaic_0001>

<llo_original>
// kernel: tpu_custom_call.1
$region0: #{tpu_custom_call.1}
  #allocation0 [shape = 'u32[]', space=smem, size = 0x4, offset = 0x4, fixed_abs, tag = 'smem constant byte address 0x4 - core index']
  #allocation1 [shape = 'u32[144,128]{1,0:T(1,128)}', space=vmem, size = 0x12000, scoped, tag = 'internal scratch']
  %s0 = inlined_call_operand.vmem [shape: f32[2,8,32], index: 0, kind: input, shape index: {}]
  %s1 = inlined_call_operand.vmem [shape: f32[8,32,24], index: 1, kind: input, shape index: {}]
  %s2 = inlined_call_operand.vmem [shape: f32[8,1,24], index: 2, kind: input, shape index: {}]
  %s3 = inlined_call_operand.vmem [shape: f32[8,8,32], index: 3, kind: input, shape index: {}]
  %s4 = inlined_call_operand.vmem [shape: f32[1,32], index: 4, kind: input, shape index: {}]
  %s5 = inlined_call_operand.vmem [shape: f32[1,32], index: 5, kind: input, shape index: {}]
  %s6 = inlined_call_operand.vmem [shape: f32[1,32], index: 6, kind: input, shape index: {}]
  %s7 = inlined_call_operand.vmem [shape: f32[32,128], index: 7, kind: input, shape index: {}]
  %s8 = inlined_call_operand.vmem [shape: f32[1,128], index: 8, kind: input, shape index: {}]
  %s9 = inlined_call_operand.vmem [shape: f32[128,32], index: 9, kind: input, shape index: {}]
  %s10 = inlined_call_operand.vmem [shape: f32[1,32], index: 10, kind: input, shape index: {}]
  %s11 = inlined_call_operand.vmem [shape: f32[1,32], index: 11, kind: input, shape index: {}]
  %s12 = inlined_call_operand.vmem [shape: f32[1,32], index: 12, kind: input, shape index: {}]
  %s13 = inlined_call_operand.hbm [shape: f32[2,8,32], index: 13, kind: output, shape index: {}]
  %s14 = sld [smem:[#allocation0]]
  $region62: #{tpu_custom_call.1} parent=0
    _
  %s16 = ssub.s32 1, %s14
  %s17 = scalar_select 0, %s16, %s14
  $region1: #{tpu_custom_call.1} parent=0
    #allocation2 [shape = 'u8[8192]{0}', space=vmem, size = 0x2000, scoped, tag = 'output window, operand 0, single buffered']
    #allocation3 [shape = 's32[1]{0}', space=sflag, size = 0x4, scoped, tag = 'scoped memory for tpu_custom_call.1']
    %18 = vsyncpa [#allocation3], 0
    // Predicated region
    $region2: #{tpu_custom_call.1} parent=1 // pred_check
      _
    $region3: #{tpu_custom_call.1} parent=1 // pred_check_branch
      %20 = sbr.rel (0) target = $region5
    $region4: #{tpu_custom_call.1} parent=1 // pred_region
      _
    $region5: #{tpu_custom_call.1} parent=1 // pred_fallthru
      _
    // Predicated region
    $region6: #{tpu_custom_call.1} parent=1 // pred_check
      _
    $region7: #{tpu_custom_call.1} parent=1 // pred_check_branch
      %22 = sbr.rel (0) target = $region9
    $region8: #{tpu_custom_call.1} parent=1 // pred_region
      _
    $region9: #{tpu_custom_call.1} parent=1 // pred_fallthru
      _
    // Predicated region
    $region10: #{tpu_custom_call.1} parent=1 // pred_check
      _
    $region11: #{tpu_custom_call.1} parent=1 // pred_check_branch
      %24 = sbr.rel (0) target = $region13
    $region12: #{tpu_custom_call.1} parent=1 // pred_region
      _
    $region13: #{tpu_custom_call.1} parent=1 // pred_fallthru
      _
    // Predicated region
    $region14: #{tpu_custom_call.1} parent=1 // pred_check
      _
    $region15: #{tpu_custom_call.1} parent=1 // pred_check_branch
      %26 = sbr.rel (0) target = $region17
    $region16: #{tpu_custom_call.1} parent=1 // pred_region
      _
    $region17: #{tpu_custom_call.1} parent=1 // pred_fallthru
      _
    // Predicated region
    $region18: #{tpu_custom_call.1} parent=1 // pred_check
      _
    $region19: #{tpu_custom_call.1} parent=1 // pred_check_branch
      %28 = sbr.rel (0) target = $region21
    $region20: #{tpu_custom_call.1} parent=1 // pred_region
      _
    $region21: #{tpu_custom_call.1} parent=1 // pred_fallthru
      _
    // Predicated region
    $region22: #{tpu_custom_call.1} parent=1 // pred_check
      _
    $region23: #{tpu_custom_call.1} parent=1 // pred_check_branch
      %30 = sbr.rel (0) target = $region25
    $region24: #{tpu_custom_call.1} parent=1 // pred_region
      _
    $region25: #{tpu_custom_call.1} parent=1 // pred_fallthru
      _
    // Predicated region
    $region26: #{tpu_custom_call.1} parent=1 // pred_check
      _
    $region27: #{tpu_custom_call.1} parent=1 // pred_check_branch
      %32 = sbr.rel (0) target = $region29
    $region28: #{tpu_custom_call.1} parent=1 // pred_region
      _
    $region29: #{tpu_custom_call.1} parent=1 // pred_fallthru
      _
    // Predicated region
    $region30: #{tpu_custom_call.1} parent=1 // pred_check
      _
    $region31: #{tpu_custom_call.1} parent=1 // pred_check_branch
      %34 = sbr.rel (0) target = $region33
    $region32: #{tpu_custom_call.1} parent=1 // pred_region
      _
    $region33: #{tpu_custom_call.1} parent=1 // pred_fallthru
      _
    // Predicated region
    $region34: #{tpu_custom_call.1} parent=1 // pred_check
      _
    $region35: #{tpu_custom_call.1} parent=1 // pred_check_branch
      %36 = sbr.rel (0) target = $region37
    $region36: #{tpu_custom_call.1} parent=1 // pred_region
      _
    $region37: #{tpu_custom_call.1} parent=1 // pred_fallthru
      _
    // Predicated region
    $region38: #{tpu_custom_call.1} parent=1 // pred_check
      _
    $region39: #{tpu_custom_call.1} parent=1 // pred_check_branch
      %38 = sbr.rel (0) target = $region41
    $region40: #{tpu_custom_call.1} parent=1 // pred_region
      _
    $region41: #{tpu_custom_call.1} parent=1 // pred_fallthru
      _
    // Predicated region
    $region42: #{tpu_custom_call.1} parent=1 // pred_check
      _
    $region43: #{tpu_custom_call.1} parent=1 // pred_check_branch
      %40 = sbr.rel (0) target = $region45
    $region44: #{tpu_custom_call.1} parent=1 // pred_region
      _
    $region45: #{tpu_custom_call.1} parent=1 // pred_fallthru
      _
    // Predicated region
    $region46: #{tpu_custom_call.1} parent=1 // pred_check
      _
    $region47: #{tpu_custom_call.1} parent=1 // pred_check_branch
      %42 = sbr.rel (0) target = $region49
    $region48: #{tpu_custom_call.1} parent=1 // pred_region
      _
    $region49: #{tpu_custom_call.1} parent=1 // pred_fallthru
      _
    // Predicated region
    $region50: #{tpu_custom_call.1} parent=1 // pred_check
      _
    $region51: #{tpu_custom_call.1} parent=1 // pred_check_branch
      %44 = sbr.rel (0) target = $region53
    $region52: #{tpu_custom_call.1} parent=1 // pred_region
      _
    $region53: #{tpu_custom_call.1} parent=1 // pred_fallthru
      _
    %v45 = vld [vmem:[%s0] sm:$0xff]
    %v46 = vld [vmem:[%s0 + $0x8] sm:$0xff]
    %v47 = vld [vmem:[%s1] sm:$0xff]
    %v48 = vld [vmem:[%s1 + $0x8] sm:$0xff]
    %v49 = vld [vmem:[%s1 + $0x10] sm:$0xff]
    %v50 = vld [vmem:[%s1 + $0x18] sm:$0xff]
    %v51 = vld [vmem:[%s1 + $0x20] sm:$0xff]
    %v52 = vld [vmem:[%s1 + $0x28] sm:$0xff]
    %v53 = vld [vmem:[%s1 + $0x30] sm:$0xff]
    %v54 = vld [vmem:[%s1 + $0x38] sm:$0xff]
    %v55 = vld [vmem:[%s1 + $0x40] sm:$0xff]
    %v56 = vld [vmem:[%s1 + $0x48] sm:$0xff]
    %v57 = vld [vmem:[%s1 + $0x50] sm:$0xff]
    %v58 = vld [vmem:[%s1 + $0x58] sm:$0xff]
    %v59 = vld [vmem:[%s1 + $0x60] sm:$0xff]
    %v60 = vld [vmem:[%s1 + $0x68] sm:$0xff]
    %v61 = vld [vmem:[%s1 + $0x70] sm:$0xff]
    %v62 = vld [vmem:[%s1 + $0x78] sm:$0xff]
    %v63 = vld [vmem:[%s1 + $0x80] sm:$0xff]
    %v64 = vld [vmem:[%s1 + $0x88] sm:$0xff]
    %v65 = vld [vmem:[%s1 + $0x90] sm:$0xff]
    %v66 = vld [vmem:[%s1 + $0x98] sm:$0xff]
    %v67 = vld [vmem:[%s1 + $0xa0] sm:$0xff]
    %v68 = vld [vmem:[%s1 + $0xa8] sm:$0xff]
    %v69 = vld [vmem:[%s1 + $0xb0] sm:$0xff]
    %v70 = vld [vmem:[%s1 + $0xb8] sm:$0xff]
    %v71 = vld [vmem:[%s1 + $0xc0] sm:$0xff]
    %v72 = vld [vmem:[%s1 + $0xc8] sm:$0xff]
    %v73 = vld [vmem:[%s1 + $0xd0] sm:$0xff]
    %v74 = vld [vmem:[%s1 + $0xd8] sm:$0xff]
    %v75 = vld [vmem:[%s1 + $0xe0] sm:$0xff]
    %v76 = vld [vmem:[%s1 + $0xe8] sm:$0xff]
    %v77 = vld [vmem:[%s1 + $0xf0] sm:$0xff]
    %v78 = vld [vmem:[%s1 + $0xf8] sm:$0xff]
    %v79 = vld [vmem:[%s2] sm:$0x1]
    %v80 = vld [vmem:[%s2 + $0x1] sm:$0x1]
    %v81 = vld [vmem:[%s2 + $0x2] sm:$0x1]
    %v82 = vld [vmem:[%s2 + $0x3] sm:$0x1]
    %v83 = vld [vmem:[%s2 + $0x4] sm:$0x1]
    %v84 = vld [vmem:[%s2 + $0x5] sm:$0x1]
    %v85 = vld [vmem:[%s2 + $0x6] sm:$0x1]
    %v86 = vld [vmem:[%s2 + $0x7] sm:$0x1]
    %v95 = vlaneseq
    %v96 = vshrl.u32 %v95, 7
    %v97 = vsub.s32 0, %v96
    %v98 = vrot.slane %v79, %v97
    %v99 = vlaneseq
    %v100 = vshrl.u32 %v99, 7
    %v101 = vsub.s32 0, %v100
    %v102 = vrot.slane %v80, %v101
    %v103 = vlaneseq
    %v104 = vshrl.u32 %v103, 7
    %v105 = vsub.s32 0, %v104
    %v106 = vrot.slane %v81, %v105
    %v107 = vlaneseq
    %v108 = vshrl.u32 %v107, 7
    %v109 = vsub.s32 0, %v108
    %v110 = vrot.slane %v82, %v109
    %v111 = vlaneseq
    %v112 = vshrl.u32 %v111, 7
    %v113 = vsub.s32 0, %v112
    %v114 = vrot.slane %v83, %v113
    %v115 = vlaneseq
    %v116 = vshrl.u32 %v115, 7
    %v117 = vsub.s32 0, %v116
    %v118 = vrot.slane %v84, %v117
    %v119 = vlaneseq
    %v120 = vshrl.u32 %v119, 7
    %v121 = vsub.s32 0, %v120
    %v122 = vrot.slane %v85, %v121
    %v123 = vlaneseq
    %v124 = vshrl.u32 %v123, 7
    %v125 = vsub.s32 0, %v124
    %v126 = vrot.slane %v86, %v125
    %vm135 = vcmask 261120
    %v137 = vsel %vm135, %v45, 0
    %139 = vmatprep.subr.mxu0 0.0
    %140 = vmatpush1.msra.mxu0 %v47
    %141 = vmatprep.subr.mxu0 0.0
    %142 = vmatpush1.msra.mxu0 %v48
    %143 = vmatprep.subr.mxu0 0.0
    %144 = vmatpush1.msra.mxu0 %v49
    %145 = vmatprep.subr.mxu0 0.0
    %146 = vmatpush1.msra.mxu0 %v50
    %147 = vmatprep.subr.mxu0 0.0
    %148 = vmatpush1.msra.mxu0 0.0
    %149 = vmatprep.subr.mxu0 0.0
    %150 = vmatpush1.msra.mxu0 0.0
    %151 = vmatprep.subr.mxu0 0.0
    %152 = vmatpush1.msra.mxu0 0.0
    %153 = vmatprep.subr.mxu0 0.0
    %154 = vmatpush1.msra.mxu0 0.0
    %155 = vmatprep.subr.mxu0 0.0
    %156 = vmatpush1.msra.mxu0 0.0
    %157 = vmatprep.subr.mxu0 0.0
    %158 = vmatpush1.msra.mxu0 0.0
    %159 = vmatprep.subr.mxu0 0.0
    %160 = vmatpush1.msra.mxu0 0.0
    %161 = vmatprep.subr.mxu0 0.0
    %162 = vmatpush1.msra.mxu0 0.0
    %163 = vmatprep.subr.mxu0 0.0
    %164 = vmatpush1.msra.mxu0 0.0
    %165 = vmatprep.subr.mxu0 0.0
    %166 = vmatpush1.msra.mxu0 0.0
    %167 = vmatprep.subr.mxu0 0.0
    %168 = vmatpush1.msra.mxu0 0.0
    %169 = vmatprep.subr.mxu0 0.0
    %170 = vmatpush1.msra.mxu0 0.0
    %171 = vmatprep.subr.mxu0 0.0
    %172 = vmatpush1.msra.mxu0 0.0
    %173 = vmatprep.subr.mxu0 0.0
    %174 = vmatpush1.msra.mxu0 0.0
    %175 = vmatprep.subr.mxu0 0.0
    %176 = vmatpush1.msra.mxu0 0.0
    %177 = vmatprep.subr.mxu0 0.0
    %178 = vmatpush1.msra.mxu0 0.0
    %179 = vmatprep.subr.mxu0 0.0
    %180 = vmatpush1.msra.mxu0 0.0
    %181 = vmatprep.subr.mxu0 0.0
    %182 = vmatpush1.msra.mxu0 0.0
    %183 = vmatprep.subr.mxu0 0.0
    %184 = vmatpush1.msra.mxu0 0.0
    %185 = vmatprep.subr.mxu0 0.0
    %186 = vmatpush1.msra.mxu0 0.0
    %187 = vmatprep.subr.mxu0 0.0
    %188 = vmatpush1.msra.mxu0 0.0
    %189 = vmatprep.subr.mxu0 0.0
    %190 = vmatpush1.msra.mxu0 0.0
    %191 = vmatprep.subr.mxu0 0.0
    %192 = vmatpush1.msra.mxu0 0.0
    %193 = vmatprep.subr.mxu0 0.0
    %194 = vmatpush1.msra.mxu0 0.0
    %195 = vmatprep.subr.mxu0 0.0
    %196 = vmatpush1.msra.mxu0 0.0
    %197 = vmatprep.subr.mxu0 0.0
    %198 = vmatpush1.msra.mxu0 0.0
    %199 = vmatprep.subr.mxu0 0.0
    %200 = vmatpush1.msra.mxu0 0.0
    %201 = vmatprep.subr.mxu0 0.0
    %202 = vmatpush1.msra.mxu0 0.0
    %203 = vmatprep.mubr.f32.mxu0 0.0
    %204 = vmatmul.mubr.f32.gmra.mrb[0].mxu0 %v137
    %v205 = vpop.f32.mrb[0].mxu0
    %v206 = vadd.f32 %v98, %v205
    %v207 = vpop.f32.mrb[0].mxu0
    %208 = vdwg.mxu0
    %v210 = vsel %vm135, %v46, 0
    %212 = vmatprep.subr.mxu0 0.0
    %213 = vmatpush1.msra.mxu0 %v51
    %214 = vmatprep.subr.mxu0 0.0
    %215 = vmatpush1.msra.mxu0 %v52
    %216 = vmatprep.subr.mxu0 0.0
    %217 = vmatpush1.msra.mxu0 %v53
    %218 = vmatprep.subr.mxu0 0.0
    %219 = vmatpush1.msra.mxu0 %v54
    %220 = vmatprep.subr.mxu0 0.0
    %221 = vmatpush1.msra.mxu0 0.0
    %222 = vmatprep.subr.mxu0 0.0
    %223 = vmatpush1.msra.mxu0 0.0
    %224 = vmatprep.subr.mxu0 0.0
    %225 = vmatpush1.msra.mxu0 0.0
    %226 = vmatprep.subr.mxu0 0.0
    %227 = vmatpush1.msra.mxu0 0.0
    %228 = vmatprep.subr.mxu0 0.0
    %229 = vmatpush1.msra.mxu0 0.0
    %230 = vmatprep.subr.mxu0 0.0
    %231 = vmatpush1.msra.mxu0 0.0
    %232 = vmatprep.subr.mxu0 0.0
    %233 = vmatpush1.msra.mxu0 0.0
    %234 = vmatprep.subr.mxu0 0.0
    %235 = vmatpush1.msra.mxu0 0.0
    %236 = vmatprep.subr.mxu0 0.0
    %237 = vmatpush1.msra.mxu0 0.0
    %238 = vmatprep.subr.mxu0 0.0
    %239 = vmatpush1.msra.mxu0 0.0
    %240 = vmatprep.subr.mxu0 0.0
    %241 = vmatpush1.msra.mxu0 0.0
    %242 = vmatprep.subr.mxu0 0.0
    %243 = vmatpush1.msra.mxu0 0.0
    %244 = vmatprep.subr.mxu0 0.0
    %245 = vmatpush1.msra.mxu0 0.0
    %246 = vmatprep.subr.mxu0 0.0
    %247 = vmatpush1.msra.mxu0 0.0
    %248 = vmatprep.subr.mxu0 0.0
    %249 = vmatpush1.msra.mxu0 0.0
    %250 = vmatprep.subr.mxu0 0.0
    %251 = vmatpush1.msra.mxu0 0.0
    %252 = vmatprep.subr.mxu0 0.0
    %253 = vmatpush1.msra.mxu0 0.0
    %254 = vmatprep.subr.mxu0 0.0
    %255 = vmatpush1.msra.mxu0 0.0
    %256 = vmatprep.subr.mxu0 0.0
    %257 = vmatpush1.msra.mxu0 0.0
    %258 = vmatprep.subr.mxu0 0.0
    %259 = vmatpush1.msra.mxu0 0.0
    %260 = vmatprep.subr.mxu0 0.0
    %261 = vmatpush1.msra.mxu0 0.0
    %262 = vmatprep.subr.mxu0 0.0
    %263 = vmatpush1.msra.mxu0 0.0
    %264 = vmatprep.subr.mxu0 0.0
    %265 = vmatpush1.msra.mxu0 0.0
    %266 = vmatprep.subr.mxu0 0.0
    %267 = vmatpush1.msra.mxu0 0.0
    %268 = vmatprep.subr.mxu0 0.0
    %269 = vmatpush1.msra.mxu0 0.0
    %270 = vmatprep.subr.mxu0 0.0
    %271 = vmatpush1.msra.mxu0 0.0
    %272 = vmatprep.subr.mxu0 0.0
    %273 = vmatpush1.msra.mxu0 0.0
    %274 = vmatprep.subr.mxu0 0.0
    %275 = vmatpush1.msra.mxu0 0.0
    %276 = vmatprep.mubr.f32.mxu0 0.0
    %277 = vmatmul.mubr.f32.gmra.mrb[0].mxu0 %v210
    %v278 = vpop.f32.mrb[0].mxu0
    %v279 = vadd.f32 %v102, %v278
    %v280 = vpop.f32.mrb[0].mxu0
    %281 = vdwg.mxu0
    %282 = vmatprep.subr.mxu0 0.0
    %283 = vmatpush1.msra.mxu0 %v55
    %284 = vmatprep.subr.mxu0 0.0
    %285 = vmatpush1.msra.mxu0 %v56
    %286 = vmatprep.subr.mxu0 0.0
    %287 = vmatpush1.msra.mxu0 %v57
    %288 = vmatprep.subr.mxu0 0.0
    %289 = vmatpush1.msra.mxu0 %v58
    %290 = vmatprep.subr.mxu0 0.0
    %291 = vmatpush1.msra.mxu0 0.0
    %292 = vmatprep.subr.mxu0 0.0
    %293 = vmatpush1.msra.mxu0 0.0
    %294 = vmatprep.subr.mxu0 0.0
    %295 = vmatpush1.msra.mxu0 0.0
    %296 = vmatprep.subr.mxu0 0.0
    %297 = vmatpush1.msra.mxu0 0.0
    %298 = vmatprep.subr.mxu0 0.0
    %299 = vmatpush1.msra.mxu0 0.0
    %300 = vmatprep.subr.mxu0 0.0
    %301 = vmatpush1.msra.mxu0 0.0
    %302 = vmatprep.subr.mxu0 0.0
    %303 = vmatpush1.msra.mxu0 0.0
    %304 = vmatprep.subr.mxu0 0.0
    %305 = vmatpush1.msra.mxu0 0.0
    %306 = vmatprep.subr.mxu0 0.0
    %307 = vmatpush1.msra.mxu0 0.0
    %308 = vmatprep.subr.mxu0 0.0
    %309 = vmatpush1.msra.mxu0 0.0
    %310 = vmatprep.subr.mxu0 0.0
    %311 = vmatpush1.msra.mxu0 0.0
    %312 = vmatprep.subr.mxu0 0.0
    %313 = vmatpush1.msra.mxu0 0.0
    %314 = vmatprep.subr.mxu0 0.0
    %315 = vmatpush1.msra.mxu0 0.0
    %316 = vmatprep.subr.mxu0 0.0
    %317 = vmatpush1.msra.mxu0 0.0
    %318 = vmatprep.subr.mxu0 0.0
    %319 = vmatpush1.msra.mxu0 0.0
    %320 = vmatprep.subr.mxu0 0.0
    %321 = vmatpush1.msra.mxu0 0.0
    %322 = vmatprep.subr.mxu0 0.0
    %323 = vmatpush1.msra.mxu0 0.0
    %324 = vmatprep.subr.mxu0 0.0
    %325 = vmatpush1.msra.mxu0 0.0
    %326 = vmatprep.subr.mxu0 0.0
    %327 = vmatpush1.msra.mxu0 0.0
    %328 = vmatprep.subr.mxu0 0.0
    %329 = vmatpush1.msra.mxu0 0.0
    %330 = vmatprep.subr.mxu0 0.0
    %331 = vmatpush1.msra.mxu0 0.0
    %332 = vmatprep.subr.mxu0 0.0
    %333 = vmatpush1.msra.mxu0 0.0
    %334 = vmatprep.subr.mxu0 0.0
    %335 = vmatpush1.msra.mxu0 0.0
    %336 = vmatprep.subr.mxu0 0.0
    %337 = vmatpush1.msra.mxu0 0.0
    %338 = vmatprep.subr.mxu0 0.0
    %339 = vmatpush1.msra.mxu0 0.0
    %340 = vmatprep.subr.mxu0 0.0
    %341 = vmatpush1.msra.mxu0 0.0
    %342 = vmatprep.subr.mxu0 0.0
    %343 = vmatpush1.msra.mxu0 0.0
    %344 = vmatprep.subr.mxu0 0.0
    %345 = vmatpush1.msra.mxu0 0.0
    %346 = vmatprep.mubr.f32.mxu0 0.0
    %347 = vmatmul.mubr.f32.gmra.mrb[0].mxu0 %v137
    %v348 = vpop.f32.mrb[0].mxu0
    %v349 = vadd.f32 %v106, %v348
    %v350 = vpop.f32.mrb[0].mxu0
    %351 = vdwg.mxu0
    %352 = vmatprep.subr.mxu0 0.0
    %353 = vmatpush1.msra.mxu0 %v59
    %354 = vmatprep.subr.mxu0 0.0
    %355 = vmatpush1.msra.mxu0 %v60
    %356 = vmatprep.subr.mxu0 0.0
    %357 = vmatpush1.msra.mxu0 %v61
    %358 = vmatprep.subr.mxu0 0.0
    %359 = vmatpush1.msra.mxu0 %v62
    %360 = vmatprep.subr.mxu0 0.0
    %361 = vmatpush1.msra.mxu0 0.0
    %362 = vmatprep.subr.mxu0 0.0
    %363 = vmatpush1.msra.mxu0 0.0
    %364 = vmatprep.subr.mxu0 0.0
    %365 = vmatpush1.msra.mxu0 0.0
    %366 = vmatprep.subr.mxu0 0.0
    %367 = vmatpush1.msra.mxu0 0.0
    %368 = vmatprep.subr.mxu0 0.0
    %369 = vmatpush1.msra.mxu0 0.0
    %370 = vmatprep.subr.mxu0 0.0
    %371 = vmatpush1.msra.mxu0 0.0
    %372 = vmatprep.subr.mxu0 0.0
    %373 = vmatpush1.msra.mxu0 0.0
    %374 = vmatprep.subr.mxu0 0.0
    %375 = vmatpush1.msra.mxu0 0.0
    %376 = vmatprep.subr.mxu0 0.0
    %377 = vmatpush1.msra.mxu0 0.0
    %378 = vmatprep.subr.mxu0 0.0
    %379 = vmatpush1.msra.mxu0 0.0
    %380 = vmatprep.subr.mxu0 0.0
    %381 = vmatpush1.msra.mxu0 0.0
    %382 = vmatprep.subr.mxu0 0.0
    %383 = vmatpush1.msra.mxu0 0.0
    %384 = vmatprep.subr.mxu0 0.0
    %385 = vmatpush1.msra.mxu0 0.0
    %386 = vmatprep.subr.mxu0 0.0
    %387 = vmatpush1.msra.mxu0 0.0
    %388 = vmatprep.subr.mxu0 0.0
    %389 = vmatpush1.msra.mxu0 0.0
    %390 = vmatprep.subr.mxu0 0.0
    %391 = vmatpush1.msra.mxu0 0.0
    %392 = vmatprep.subr.mxu0 0.0
    %393 = vmatpush1.msra.mxu0 0.0
    %394 = vmatprep.subr.mxu0 0.0
    %395 = vmatpush1.msra.mxu0 0.0
    %396 = vmatprep.subr.mxu0 0.0
    %397 = vmatpush1.msra.mxu0 0.0
    %398 = vmatprep.subr.mxu0 0.0
    %399 = vmatpush1.msra.mxu0 0.0
    %400 = vmatprep.subr.mxu0 0.0
    %401 = vmatpush1.msra.mxu0 0.0
    %402 = vmatprep.subr.mxu0 0.0
    %403 = vmatpush1.msra.mxu0 0.0
    %404 = vmatprep.subr.mxu0 0.0
    %405 = vmatpush1.msra.mxu0 0.0
    %406 = vmatprep.subr.mxu0 0.0
    %407 = vmatpush1.msra.mxu0 0.0
    %408 = vmatprep.subr.mxu0 0.0
    %409 = vmatpush1.msra.mxu0 0.0
    %410 = vmatprep.subr.mxu0 0.0
    %411 = vmatpush1.msra.mxu0 0.0
    %412 = vmatprep.subr.mxu0 0.0
    %413 = vmatpush1.msra.mxu0 0.0
    %414 = vmatprep.subr.mxu0 0.0
    %415 = vmatpush1.msra.mxu0 0.0
    %416 = vmatprep.mubr.f32.mxu0 0.0
    %417 = vmatmul.mubr.f32.gmra.mrb[0].mxu0 %v210
    %v418 = vpop.f32.mrb[0].mxu0
    %v419 = vadd.f32 %v110, %v418
    %v420 = vpop.f32.mrb[0].mxu0
    %421 = vdwg.mxu0
    %422 = vmatprep.subr.mxu0 0.0
    %423 = vmatpush1.msra.mxu0 %v63
    %424 = vmatprep.subr.mxu0 0.0
    %425 = vmatpush1.msra.mxu0 %v64
    %426 = vmatprep.subr.mxu0 0.0
    %427 = vmatpush1.msra.mxu0 %v65
    %428 = vmatprep.subr.mxu0 0.0
    %429 = vmatpush1.msra.mxu0 %v66
    %430 = vmatprep.subr.mxu0 0.0
    %431 = vmatpush1.msra.mxu0 0.0
    %432 = vmatprep.subr.mxu0 0.0
    %433 = vmatpush1.msra.mxu0 0.0
    %434 = vmatprep.subr.mxu0 0.0
    %435 = vmatpush1.msra.mxu0 0.0
    %436 = vmatprep.subr.mxu0 0.0
    %437 = vmatpush1.msra.mxu0 0.0
    %438 = vmatprep.subr.mxu0 0.0
    %439 = vmatpush1.msra.mxu0 0.0
    %440 = vmatprep.subr.mxu0 0.0
    %441 = vmatpush1.msra.mxu0 0.0
    %442 = vmatprep.subr.mxu0 0.0
    %443 = vmatpush1.msra.mxu0 0.0
    %444 = vmatprep.subr.mxu0 0.0
    %445 = vmatpush1.msra.mxu0 0.0
    %446 = vmatprep.subr.mxu0 0.0
    %447 = vmatpush1.msra.mxu0 0.0
    %448 = vmatprep.subr.mxu0 0.0
    %449 = vmatpush1.msra.mxu0 0.0
    %450 = vmatprep.subr.mxu0 0.0
    %451 = vmatpush1.msra.mxu0 0.0
    %452 = vmatprep.subr.mxu0 0.0
    %453 = vmatpush1.msra.mxu0 0.0
    %454 = vmatprep.subr.mxu0 0.0
    %455 = vmatpush1.msra.mxu0 0.0
    %456 = vmatprep.subr.mxu0 0.0
    %457 = vmatpush1.msra.mxu0 0.0
    %458 = vmatprep.subr.mxu0 0.0
    %459 = vmatpush1.msra.mxu0 0.0
    %460 = vmatprep.subr.mxu0 0.0
    %461 = vmatpush1.msra.mxu0 0.0
    %462 = vmatprep.subr.mxu0 0.0
    %463 = vmatpush1.msra.mxu0 0.0
    %464 = vmatprep.subr.mxu0 0.0
    %465 = vmatpush1.msra.mxu0 0.0
    %466 = vmatprep.subr.mxu0 0.0
    %467 = vmatpush1.msra.mxu0 0.0
    %468 = vmatprep.subr.mxu0 0.0
    %469 = vmatpush1.msra.mxu0 0.0
    %470 = vmatprep.subr.mxu0 0.0
    %471 = vmatpush1.msra.mxu0 0.0
    %472 = vmatprep.subr.mxu0 0.0
    %473 = vmatpush1.msra.mxu0 0.0
    %474 = vmatprep.subr.mxu0 0.0
    %475 = vmatpush1.msra.mxu0 0.0
    %476 = vmatprep.subr.mxu0 0.0
    %477 = vmatpush1.msra.mxu0 0.0
    %478 = vmatprep.subr.mxu0 0.0
    %479 = vmatpush1.msra.mxu0 0.0
    %480 = vmatprep.subr.mxu0 0.0
    %481 = vmatpush1.msra.mxu0 0.0
    %482 = vmatprep.subr.mxu0 0.0
    %483 = vmatpush1.msra.mxu0 0.0
    %484 = vmatprep.subr.mxu0 0.0
    %485 = vmatpush1.msra.mxu0 0.0
    %486 = vmatprep.mubr.f32.mxu0 0.0
    %487 = vmatmul.mubr.f32.gmra.mrb[0].mxu0 %v137
    %v488 = vpop.f32.mrb[0].mxu0
    %v489 = vadd.f32 %v114, %v488
    %v490 = vpop.f32.mrb[0].mxu0
    %491 = vdwg.mxu0
    %492 = vmatprep.subr.mxu0 0.0
    %493 = vmatpush1.msra.mxu0 %v67
    %494 = vmatprep.subr.mxu0 0.0
    %495 = vmatpush1.msra.mxu0 %v68
    %496 = vmatprep.subr.mxu0 0.0
    %497 = vmatpush1.msra.mxu0 %v69
    %498 = vmatprep.subr.mxu0 0.0
    %499 = vmatpush1.msra.mxu0 %v70
    %500 = vmatprep.subr.mxu0 0.0
    %501 = vmatpush1.msra.mxu0 0.0
    %502 = vmatprep.subr.mxu0 0.0
    %503 = vmatpush1.msra.mxu0 0.0
    %504 = vmatprep.subr.mxu0 0.0
    %505 = vmatpush1.msra.mxu0 0.0
    %506 = vmatprep.subr.mxu0 0.0
    %507 = vmatpush1.msra.mxu0 0.0
    %508 = vmatprep.subr.mxu0 0.0
    %509 = vmatpush1.msra.mxu0 0.0
    %510 = vmatprep.subr.mxu0 0.0
    %511 = vmatpush1.msra.mxu0 0.0
    %512 = vmatprep.subr.mxu0 0.0
    %513 = vmatpush1.msra.mxu0 0.0
    %514 = vmatprep.subr.mxu0 0.0
    %515 = vmatpush1.msra.mxu0 0.0
    %516 = vmatprep.subr.mxu0 0.0
    %517 = vmatpush1.msra.mxu0 0.0
    %518 = vmatprep.subr.mxu0 0.0
    %519 = vmatpush1.msra.mxu0 0.0
    %520 = vmatprep.subr.mxu0 0.0
    %521 = vmatpush1.msra.mxu0 0.0
    %522 = vmatprep.subr.mxu0 0.0
    %523 = vmatpush1.msra.mxu0 0.0
    %524 = vmatprep.subr.mxu0 0.0
    %525 = vmatpush1.msra.mxu0 0.0
    %526 = vmatprep.subr.mxu0 0.0
    %527 = vmatpush1.msra.mxu0 0.0
    %528 = vmatprep.subr.mxu0 0.0
    %529 = vmatpush1.msra.mxu0 0.0
    %530 = vmatprep.subr.mxu0 0.0
    %531 = vmatpush1.msra.mxu0 0.0
    %532 = vmatprep.subr.mxu0 0.0
    %533 = vmatpush1.msra.mxu0 0.0
    %534 = vmatprep.subr.mxu0 0.0
    %535 = vmatpush1.msra.mxu0 0.0
    %536 = vmatprep.subr.mxu0 0.0
    %537 = vmatpush1.msra.mxu0 0.0
    %538 = vmatprep.subr.mxu0 0.0
    %539 = vmatpush1.msra.mxu0 0.0
    %540 = vmatprep.subr.mxu0 0.0
    %541 = vmatpush1.msra.mxu0 0.0
    %542 = vmatprep.subr.mxu0 0.0
    %543 = vmatpush1.msra.mxu0 0.0
    %544 = vmatprep.subr.mxu0 0.0
    %545 = vmatpush1.msra.mxu0 0.0
    %546 = vmatprep.subr.mxu0 0.0
    %547 = vmatpush1.msra.mxu0 0.0
    %548 = vmatprep.subr.mxu0 0.0
    %549 = vmatpush1.msra.mxu0 0.0
    %550 = vmatprep.subr.mxu0 0.0
    %551 = vmatpush1.msra.mxu0 0.0
    %552 = vmatprep.subr.mxu0 0.0
    %553 = vmatpush1.msra.mxu0 0.0
    %554 = vmatprep.subr.mxu0 0.0
    %555 = vmatpush1.msra.mxu0 0.0
    %556 = vmatprep.mubr.f32.mxu0 0.0
    %557 = vmatmul.mubr.f32.gmra.mrb[0].mxu0 %v210
    %v558 = vpop.f32.mrb[0].mxu0
    %v559 = vadd.f32 %v118, %v558
    %v560 = vpop.f32.mrb[0].mxu0
    %561 = vdwg.mxu0
    %562 = vmatprep.subr.mxu0 0.0
    %563 = vmatpush1.msra.mxu0 %v71
    %564 = vmatprep.subr.mxu0 0.0
    %565 = vmatpush1.msra.mxu0 %v72
    %566 = vmatprep.subr.mxu0 0.0
    %567 = vmatpush1.msra.mxu0 %v73
    %568 = vmatprep.subr.mxu0 0.0
    %569 = vmatpush1.msra.mxu0 %v74
    %570 = vmatprep.subr.mxu0 0.0
    %571 = vmatpush1.msra.mxu0 0.0
    %572 = vmatprep.subr.mxu0 0.0
    %573 = vmatpush1.msra.mxu0 0.0
    %574 = vmatprep.subr.mxu0 0.0
    %575 = vmatpush1.msra.mxu0 0.0
    %576 = vmatprep.subr.mxu0 0.0
    %577 = vmatpush1.msra.mxu0 0.0
    %578 = vmatprep.subr.mxu0 0.0
    %579 = vmatpush1.msra.mxu0 0.0
    %580 = vmatprep.subr.mxu0 0.0
    %581 = vmatpush1.msra.mxu0 0.0
    %582 = vmatprep.subr.mxu0 0.0
    %583 = vmatpush1.msra.mxu0 0.0
    %584 = vmatprep.subr.mxu0 0.0
    %585 = vmatpush1.msra.mxu0 0.0
    %586 = vmatprep.subr.mxu0 0.0
    %587 = vmatpush1.msra.mxu0 0.0
    %588 = vmatprep.subr.mxu0 0.0
    %589 = vmatpush1.msra.mxu0 0.0
    %590 = vmatprep.subr.mxu0 0.0
    %591 = vmatpush1.msra.mxu0 0.0
    %592 = vmatprep.subr.mxu0 0.0
    %593 = vmatpush1.msra.mxu0 0.0
    %594 = vmatprep.subr.mxu0 0.0
    %595 = vmatpush1.msra.mxu0 0.0
    %596 = vmatprep.subr.mxu0 0.0
    %597 = vmatpush1.msra.mxu0 0.0
    %598 = vmatprep.subr.mxu0 0.0
    %599 = vmatpush1.msra.mxu0 0.0
    %600 = vmatprep.subr.mxu0 0.0
    %601 = vmatpush1.msra.mxu0 0.0
    %602 = vmatprep.subr.mxu0 0.0
    %603 = vmatpush1.msra.mxu0 0.0
    %604 = vmatprep.subr.mxu0 0.0
    %605 = vmatpush1.msra.mxu0 0.0
    %606 = vmatprep.subr.mxu0 0.0
    %607 = vmatpush1.msra.mxu0 0.0
    %608 = vmatprep.subr.mxu0 0.0
    %609 = vmatpush1.msra.mxu0 0.0
    %610 = vmatprep.subr.mxu0 0.0
    %611 = vmatpush1.msra.mxu0 0.0
    %612 = vmatprep.subr.mxu0 0.0
    %613 = vmatpush1.msra.mxu0 0.0
    %614 = vmatprep.subr.mxu0 0.0
    %615 = vmatpush1.msra.mxu0 0.0
    %616 = vmatprep.subr.mxu0 0.0
    %617 = vmatpush1.msra.mxu0 0.0
    %618 = vmatprep.subr.mxu0 0.0
    %619 = vmatpush1.msra.mxu0 0.0
    %620 = vmatprep.subr.mxu0 0.0
    %621 = vmatpush1.msra.mxu0 0.0
    %622 = vmatprep.subr.mxu0 0.0
    %623 = vmatpush1.msra.mxu0 0.0
    %624 = vmatprep.subr.mxu0 0.0
    %625 = vmatpush1.msra.mxu0 0.0
    %626 = vmatprep.mubr.f32.mxu0 0.0
    %627 = vmatmul.mubr.f32.gmra.mrb[0].mxu0 %v137
    %v628 = vpop.f32.mrb[0].mxu0
    %v629 = vadd.f32 %v122, %v628
    %v630 = vpop.f32.mrb[0].mxu0
    %631 = vdwg.mxu0
    %632 = vmatprep.subr.mxu0 0.0
    %633 = vmatpush1.msra.mxu0 %v75
    %634 = vmatprep.subr.mxu0 0.0
    %635 = vmatpush1.msra.mxu0 %v76
    %636 = vmatprep.subr.mxu0 0.0
    %637 = vmatpush1.msra.mxu0 %v77
    %638 = vmatprep.subr.mxu0 0.0
    %639 = vmatpush1.msra.mxu0 %v78
    %640 = vmatprep.subr.mxu0 0.0
    %641 = vmatpush1.msra.mxu0 0.0
    %642 = vmatprep.subr.mxu0 0.0
    %643 = vmatpush1.msra.mxu0 0.0
    %644 = vmatprep.subr.mxu0 0.0
    %645 = vmatpush1.msra.mxu0 0.0
    %646 = vmatprep.subr.mxu0 0.0
    %647 = vmatpush1.msra.mxu0 0.0
    %648 = vmatprep.subr.mxu0 0.0
    %649 = vmatpush1.msra.mxu0 0.0
    %650 = vmatprep.subr.mxu0 0.0
    %651 = vmatpush1.msra.mxu0 0.0
    %652 = vmatprep.subr.mxu0 0.0
    %653 = vmatpush1.msra.mxu0 0.0
    %654 = vmatprep.subr.mxu0 0.0
    %655 = vmatpush1.msra.mxu0 0.0
    %656 = vmatprep.subr.mxu0 0.0
    %657 = vmatpush1.msra.mxu0 0.0
    %658 = vmatprep.subr.mxu0 0.0
    %659 = vmatpush1.msra.mxu0 0.0
    %660 = vmatprep.subr.mxu0 0.0
    %661 = vmatpush1.msra.mxu0 0.0
    %662 = vmatprep.subr.mxu0 0.0
    %663 = vmatpush1.msra.mxu0 0.0
    %664 = vmatprep.subr.mxu0 0.0
    %665 = vmatpush1.msra.mxu0 0.0
    %666 = vmatprep.subr.mxu0 0.0
    %667 = vmatpush1.msra.mxu0 0.0
    %668 = vmatprep.subr.mxu0 0.0
    %669 = vmatpush1.msra.mxu0 0.0
    %670 = vmatprep.subr.mxu0 0.0
    %671 = vmatpush1.msra.mxu0 0.0
    %672 = vmatprep.subr.mxu0 0.0
    %673 = vmatpush1.msra.mxu0 0.0
    %674 = vmatprep.subr.mxu0 0.0
    %675 = vmatpush1.msra.mxu0 0.0
    %676 = vmatprep.subr.mxu0 0.0
    %677 = vmatpush1.msra.mxu0 0.0
    %678 = vmatprep.subr.mxu0 0.0
    %679 = vmatpush1.msra.mxu0 0.0
    %680 = vmatprep.subr.mxu0 0.0
    %681 = vmatpush1.msra.mxu0 0.0
    %682 = vmatprep.subr.mxu0 0.0
    %683 = vmatpush1.msra.mxu0 0.0
    %684 = vmatprep.subr.mxu0 0.0
    %685 = vmatpush1.msra.mxu0 0.0
    %686 = vmatprep.subr.mxu0 0.0
    %687 = vmatpush1.msra.mxu0 0.0
    %688 = vmatprep.subr.mxu0 0.0
    %689 = vmatpush1.msra.mxu0 0.0
    %690 = vmatprep.subr.mxu0 0.0
    %691 = vmatpush1.msra.mxu0 0.0
    %692 = vmatprep.subr.mxu0 0.0
    %693 = vmatpush1.msra.mxu0 0.0
    %694 = vmatprep.subr.mxu0 0.0
    %695 = vmatpush1.msra.mxu0 0.0
    %696 = vmatprep.mubr.f32.mxu0 0.0
    %697 = vmatmul.mubr.f32.gmra.mrb[0].mxu0 %v210
    %v698 = vpop.f32.mrb[0].mxu0
    %v699 = vadd.f32 %v126, %v698
    %v700 = vpop.f32.mrb[0].mxu0
    %701 = vdwg.mxu0
    %703 = vrot.lane.b32.xlu0 %v206, 120
    %v704 = vpop.permute.xlu0 %703
    %vm705 = vcmask 64512
    %v706 = vsel %vm705, %v206, 0
    %v708 = vsel %vm705, %v704, 0
    %710 = vmatprep.subr.mxu0 0.0
    %711 = vmatpush1.xpose.msra.mxu0 %v708
    %712 = vmatprep.subr.mxu0 0.0
    %713 = vmatpush1.xpose.msra.mxu0 0.0
    %714 = vmatprep.subr.mxu0 0.0
    %715 = vmatpush1.xpose.msra.mxu0 0.0
    %716 = vmatprep.subr.mxu0 0.0
    %717 = vmatpush1.xpose.msra.mxu0 0.0
    %718 = vmatprep.subr.mxu0 0.0
    %719 = vmatpush1.xpose.msra.mxu0 0.0
    %720 = vmatprep.subr.mxu0 0.0
    %721 = vmatpush1.xpose.msra.mxu0 0.0
    %722 = vmatprep.subr.mxu0 0.0
    %723 = vmatpush1.xpose.msra.mxu0 0.0
    %724 = vmatprep.subr.mxu0 0.0
    %725 = vmatpush1.xpose.msra.mxu0 0.0
    %726 = vmatprep.subr.mxu0 0.0
    %727 = vmatpush1.xpose.msra.mxu0 0.0
    %728 = vmatprep.subr.mxu0 0.0
    %729 = vmatpush1.xpose.msra.mxu0 0.0
    %730 = vmatprep.subr.mxu0 0.0
    %731 = vmatpush1.xpose.msra.mxu0 0.0
    %732 = vmatprep.subr.mxu0 0.0
    %733 = vmatpush1.xpose.msra.mxu0 0.0
    %734 = vmatprep.subr.mxu0 0.0
    %735 = vmatpush1.xpose.msra.mxu0 0.0
    %736 = vmatprep.subr.mxu0 0.0
    %737 = vmatpush1.xpose.msra.mxu0 0.0
    %738 = vmatprep.subr.mxu0 0.0
    %739 = vmatpush1.xpose.msra.mxu0 0.0
    %740 = vmatprep.subr.mxu0 0.0
    %741 = vmatpush1.xpose.msra.mxu0 0.0
    %742 = vmatprep.subr.mxu0 0.0
    %743 = vmatpush1.xpose.msra.mxu0 0.0
    %744 = vmatprep.subr.mxu0 0.0
    %745 = vmatpush1.xpose.msra.mxu0 0.0
    %746 = vmatprep.subr.mxu0 0.0
    %747 = vmatpush1.xpose.msra.mxu0 0.0
    %748 = vmatprep.subr.mxu0 0.0
    %749 = vmatpush1.xpose.msra.mxu0 0.0
    %750 = vmatprep.subr.mxu0 0.0
    %751 = vmatpush1.xpose.msra.mxu0 0.0
    %752 = vmatprep.subr.mxu0 0.0
    %753 = vmatpush1.xpose.msra.mxu0 0.0
    %754 = vmatprep.subr.mxu0 0.0
    %755 = vmatpush1.xpose.msra.mxu0 0.0
    %756 = vmatprep.subr.mxu0 0.0
    %757 = vmatpush1.xpose.msra.mxu0 0.0
    %758 = vmatprep.subr.mxu0 0.0
    %759 = vmatpush1.xpose.msra.mxu0 0.0
    %760 = vmatprep.subr.mxu0 0.0
    %761 = vmatpush1.xpose.msra.mxu0 0.0
    %762 = vmatprep.subr.mxu0 0.0
    %763 = vmatpush1.xpose.msra.mxu0 0.0
    %764 = vmatprep.subr.mxu0 0.0
    %765 = vmatpush1.xpose.msra.mxu0 0.0
    %766 = vmatprep.subr.mxu0 0.0
    %767 = vmatpush1.xpose.msra.mxu0 0.0
    %768 = vmatprep.subr.mxu0 0.0
    %769 = vmatpush1.xpose.msra.mxu0 0.0
    %770 = vmatprep.subr.mxu0 0.0
    %771 = vmatpush1.xpose.msra.mxu0 0.0
    %772 = vmatprep.subr.mxu0 0.0
    %773 = vmatpush1.xpose.msra.mxu0 0.0
    %774 = vmatprep.mubr.f32.mxu0 0.0
    %775 = vmatmul.mubr.f32.gmra.mrb[0].mxu0 %v706
    %v776 = vpop.f32.mrb[0].mxu0
    %v777 = vadd.f32 0.0, %v776
    %v778 = vpop.f32.mrb[0].mxu0
    %779 = vdwg.mxu0
    %781 = vrot.lane.b32.xlu0 %v279, 120
    %v782 = vpop.permute.xlu0 %781
    %v783 = vsel %vm705, %v279, 0
    %v785 = vsel %vm705, %v782, 0
    %787 = vmatprep.subr.mxu0 0.0
    %788 = vmatpush1.xpose.msra.mxu0 %v785
    %789 = vmatprep.subr.mxu0 0.0
    %790 = vmatpush1.xpose.msra.mxu0 0.0
    %791 = vmatprep.subr.mxu0 0.0
    %792 = vmatpush1.xpose.msra.mxu0 0.0
    %793 = vmatprep.subr.mxu0 0.0
    %794 = vmatpush1.xpose.msra.mxu0 0.0
    %795 = vmatprep.subr.mxu0 0.0
    %796 = vmatpush1.xpose.msra.mxu0 0.0
    %797 = vmatprep.subr.mxu0 0.0
    %798 = vmatpush1.xpose.msra.mxu0 0.0
    %799 = vmatprep.subr.mxu0 0.0
    %800 = vmatpush1.xpose.msra.mxu0 0.0
    %801 = vmatprep.subr.mxu0 0.0
    %802 = vmatpush1.xpose.msra.mxu0 0.0
    %803 = vmatprep.subr.mxu0 0.0
    %804 = vmatpush1.xpose.msra.mxu0 0.0
    %805 = vmatprep.subr.mxu0 0.0
    %806 = vmatpush1.xpose.msra.mxu0 0.0
    %807 = vmatprep.subr.mxu0 0.0
    %808 = vmatpush1.xpose.msra.mxu0 0.0
    %809 = vmatprep.subr.mxu0 0.0
    %810 = vmatpush1.xpose.msra.mxu0 0.0
    %811 = vmatprep.subr.mxu0 0.0
    %812 = vmatpush1.xpose.msra.mxu0 0.0
    %813 = vmatprep.subr.mxu0 0.0
    %814 = vmatpush1.xpose.msra.mxu0 0.0
    %815 = vmatprep.subr.mxu0 0.0
    %816 = vmatpush1.xpose.msra.mxu0 0.0
    %817 = vmatprep.subr.mxu0 0.0
    %818 = vmatpush1.xpose.msra.mxu0 0.0
    %819 = vmatprep.subr.mxu0 0.0
    %820 = vmatpush1.xpose.msra.mxu0 0.0
    %821 = vmatprep.subr.mxu0 0.0
    %822 = vmatpush1.xpose.msra.mxu0 0.0
    %823 = vmatprep.subr.mxu0 0.0
    %824 = vmatpush1.xpose.msra.mxu0 0.0
    %825 = vmatprep.subr.mxu0 0.0
    %826 = vmatpush1.xpose.msra.mxu0 0.0
    %827 = vmatprep.subr.mxu0 0.0
    %828 = vmatpush1.xpose.msra.mxu0 0.0
    %829 = vmatprep.subr.mxu0 0.0
    %830 = vmatpush1.xpose.msra.mxu0 0.0
    %831 = vmatprep.subr.mxu0 0.0
    %832 = vmatpush1.xpose.msra.mxu0 0.0
    %833 = vmatprep.subr.mxu0 0.0
    %834 = vmatpush1.xpose.msra.mxu0 0.0
    %835 = vmatprep.subr.mxu0 0.0
    %836 = vmatpush1.xpose.msra.mxu0 0.0
    %837 = vmatprep.subr.mxu0 0.0
    %838 = vmatpush1.xpose.msra.mxu0 0.0
    %839 = vmatprep.subr.mxu0 0.0
    %840 = vmatpush1.xpose.msra.mxu0 0.0
    %841 = vmatprep.subr.mxu0 0.0
    %842 = vmatpush1.xpose.msra.mxu0 0.0
    %843 = vmatprep.subr.mxu0 0.0
    %844 = vmatpush1.xpose.msra.mxu0 0.0
    %845 = vmatprep.subr.mxu0 0.0
    %846 = vmatpush1.xpose.msra.mxu0 0.0
    %847 = vmatprep.subr.mxu0 0.0
    %848 = vmatpush1.xpose.msra.mxu0 0.0
    %849 = vmatprep.subr.mxu0 0.0
    %850 = vmatpush1.xpose.msra.mxu0 0.0
    %851 = vmatprep.mubr.f32.mxu0 0.0
    %852 = vmatmul.mubr.f32.gmra.mrb[0].mxu0 %v783
    %v853 = vpop.f32.mrb[0].mxu0
    %v854 = vadd.f32 0.0, %v853
    %v855 = vpop.f32.mrb[0].mxu0
    %856 = vdwg.mxu0
    %858 = vrot.lane.b32.xlu0 %v349, 120
    %v859 = vpop.permute.xlu0 %858
    %v860 = vsel %vm705, %v349, 0
    %v862 = vsel %vm705, %v859, 0
    %864 = vmatprep.subr.mxu0 0.0
    %865 = vmatpush1.xpose.msra.mxu0 %v862
    %866 = vmatprep.subr.mxu0 0.0
    %867 = vmatpush1.xpose.msra.mxu0 0.0
    %868 = vmatprep.subr.mxu0 0.0
    %869 = vmatpush1.xpose.msra.mxu0 0.0
    %870 = vmatprep.subr.mxu0 0.0
    %871 = vmatpush1.xpose.msra.mxu0 0.0
    %872 = vmatprep.subr.mxu0 0.0
    %873 = vmatpush1.xpose.msra.mxu0 0.0
    %874 = vmatprep.subr.mxu0 0.0
    %875 = vmatpush1.xpose.msra.mxu0 0.0
    %876 = vmatprep.subr.mxu0 0.0
    %877 = vmatpush1.xpose.msra.mxu0 0.0
    %878 = vmatprep.subr.mxu0 0.0
    %879 = vmatpush1.xpose.msra.mxu0 0.0
    %880 = vmatprep.subr.mxu0 0.0
    %881 = vmatpush1.xpose.msra.mxu0 0.0
    %882 = vmatprep.subr.mxu0 0.0
    %883 = vmatpush1.xpose.msra.mxu0 0.0
    %884 = vmatprep.subr.mxu0 0.0
    %885 = vmatpush1.xpose.msra.mxu0 0.0
    %886 = vmatprep.subr.mxu0 0.0
    %887 = vmatpush1.xpose.msra.mxu0 0.0
    %888 = vmatprep.subr.mxu0 0.0
    %889 = vmatpush1.xpose.msra.mxu0 0.0
    %890 = vmatprep.subr.mxu0 0.0
    %891 = vmatpush1.xpose.msra.mxu0 0.0
    %892 = vmatprep.subr.mxu0 0.0
    %893 = vmatpush1.xpose.msra.mxu0 0.0
    %894 = vmatprep.subr.mxu0 0.0
    %895 = vmatpush1.xpose.msra.mxu0 0.0
    %896 = vmatprep.subr.mxu0 0.0
    %897 = vmatpush1.xpose.msra.mxu0 0.0
    %898 = vmatprep.subr.mxu0 0.0
    %899 = vmatpush1.xpose.msra.mxu0 0.0
    %900 = vmatprep.subr.mxu0 0.0
    %901 = vmatpush1.xpose.msra.mxu0 0.0
    %902 = vmatprep.subr.mxu0 0.0
    %903 = vmatpush1.xpose.msra.mxu0 0.0
    %904 = vmatprep.subr.mxu0 0.0
    %905 = vmatpush1.xpose.msra.mxu0 0.0
    %906 = vmatprep.subr.mxu0 0.0
    %907 = vmatpush1.xpose.msra.mxu0 0.0
    %908 = vmatprep.subr.mxu0 0.0
    %909 = vmatpush1.xpose.msra.mxu0 0.0
    %910 = vmatprep.subr.mxu0 0.0
    %911 = vmatpush1.xpose.msra.mxu0 0.0
    %912 = vmatprep.subr.mxu0 0.0
    %913 = vmatpush1.xpose.msra.mxu0 0.0
    %914 = vmatprep.subr.mxu0 0.0
    %915 = vmatpush1.xpose.msra.mxu0 0.0
    %916 = vmatprep.subr.mxu0 0.0
    %917 = vmatpush1.xpose.msra.mxu0 0.0
    %918 = vmatprep.subr.mxu0 0.0
    %919 = vmatpush1.xpose.msra.mxu0 0.0
    %920 = vmatprep.subr.mxu0 0.0
    %921 = vmatpush1.xpose.msra.mxu0 0.0
    %922 = vmatprep.subr.mxu0 0.0
    %923 = vmatpush1.xpose.msra.mxu0 0.0
    %924 = vmatprep.subr.mxu0 0.0
    %925 = vmatpush1.xpose.msra.mxu0 0.0
    %926 = vmatprep.subr.mxu0 0.0
    %927 = vmatpush1.xpose.msra.mxu0 0.0
    %928 = vmatprep.mubr.f32.mxu0 0.0
    %929 = vmatmul.mubr.f32.gmra.mrb[0].mxu0 %v860
    %v930 = vpop.f32.mrb[0].mxu0
    %v931 = vadd.f32 0.0, %v930
    %v932 = vpop.f32.mrb[0].mxu0
    %933 = vdwg.mxu0
    %935 = vrot.lane.b32.xlu0 %v419, 120
    %v936 = vpop.permute.xlu0 %935
    %v937 = vsel %vm705, %v419, 0
    %v939 = vsel %vm705, %v936, 0
    %941 = vmatprep.subr.mxu0 0.0
    %942 = vmatpush1.xpose.msra.mxu0 %v939
    %943 = vmatprep.subr.mxu0 0.0
    %944 = vmatpush1.xpose.msra.mxu0 0.0
    %945 = vmatprep.subr.mxu0 0.0
    %946 = vmatpush1.xpose.msra.mxu0 0.0
    %947 = vmatprep.subr.mxu0 0.0
    %948 = vmatpush1.xpose.msra.mxu0 0.0
    %949 = vmatprep.subr.mxu0 0.0
    %950 = vmatpush1.xpose.msra.mxu0 0.0
    %951 = vmatprep.subr.mxu0 0.0
    %952 = vmatpush1.xpose.msra.mxu0 0.0
    %953 = vmatprep.subr.mxu0 0.0
    %954 = vmatpush1.xpose.msra.mxu0 0.0
    %955 = vmatprep.subr.mxu0 0.0
    %956 = vmatpush1.xpose.msra.mxu0 0.0
    %957 = vmatprep.subr.mxu0 0.0
    %958 = vmatpush1.xpose.msra.mxu0 0.0
    %959 = vmatprep.subr.mxu0 0.0
    %960 = vmatpush1.xpose.msra.mxu0 0.0
    %961 = vmatprep.subr.mxu0 0.0
    %962 = vmatpush1.xpose.msra.mxu0 0.0
    %963 = vmatprep.subr.mxu0 0.0
    %964 = vmatpush1.xpose.msra.mxu0 0.0
    %965 = vmatprep.subr.mxu0 0.0
    %966 = vmatpush1.xpose.msra.mxu0 0.0
    %967 = vmatprep.subr.mxu0 0.0
    %968 = vmatpush1.xpose.msra.mxu0 0.0
    %969 = vmatprep.subr.mxu0 0.0
    %970 = vmatpush1.xpose.msra.mxu0 0.0
    %971 = vmatprep.subr.mxu0 0.0
    %972 = vmatpush1.xpose.msra.mxu0 0.0
    %973 = vmatprep.subr.mxu0 0.0
    %974 = vmatpush1.xpose.msra.mxu0 0.0
    %975 = vmatprep.subr.mxu0 0.0
    %976 = vmatpush1.xpose.msra.mxu0 0.0
    %977 = vmatprep.subr.mxu0 0.0
    %978 = vmatpush1.xpose.msra.mxu0 0.0
    %979 = vmatprep.subr.mxu0 0.0
    %980 = vmatpush1.xpose.msra.mxu0 0.0
    %981 = vmatprep.subr.mxu0 0.0
    %982 = vmatpush1.xpose.msra.mxu0 0.0
    %983 = vmatprep.subr.mxu0 0.0
    %984 = vmatpush1.xpose.msra.mxu0 0.0
    %985 = vmatprep.subr.mxu0 0.0
    %986 = vmatpush1.xpose.msra.mxu0 0.0
    %987 = vmatprep.subr.mxu0 0.0
    %988 = vmatpush1.xpose.msra.mxu0 0.0
    %989 = vmatprep.subr.mxu0 0.0
    %990 = vmatpush1.xpose.msra.mxu0 0.0
    %991 = vmatprep.subr.mxu0 0.0
    %992 = vmatpush1.xpose.msra.mxu0 0.0
    %993 = vmatprep.subr.mxu0 0.0
    %994 = vmatpush1.xpose.msra.mxu0 0.0
    %995 = vmatprep.subr.mxu0 0.0
    %996 = vmatpush1.xpose.msra.mxu0 0.0
    %997 = vmatprep.subr.mxu0 0.0
    %998 = vmatpush1.xpose.msra.mxu0 0.0
    %999 = vmatprep.subr.mxu0 0.0
    %1000 = vmatpush1.xpose.msra.mxu0 0.0
    %1001 = vmatprep.subr.mxu0 0.0
    %1002 = vmatpush1.xpose.msra.mxu0 0.0
    %1003 = vmatprep.subr.mxu0 0.0
    %1004 = vmatpush1.xpose.msra.mxu0 0.0
    %1005 = vmatprep.mubr.f32.mxu0 0.0
    %1006 = vmatmul.mubr.f32.gmra.mrb[0].mxu0 %v937
    %v1007 = vpop.f32.mrb[0].mxu0
    %v1008 = vadd.f32 0.0, %v1007
    %v1009 = vpop.f32.mrb[0].mxu0
    %1010 = vdwg.mxu0
    %1012 = vrot.lane.b32.xlu0 %v489, 120
    %v1013 = vpop.permute.xlu0 %1012
    %v1014 = vsel %vm705, %v489, 0
    %v1016 = vsel %vm705, %v1013, 0
    %1018 = vmatprep.subr.mxu0 0.0
    %1019 = vmatpush1.xpose.msra.mxu0 %v1016
    %1020 = vmatprep.subr.mxu0 0.0
    %1021 = vmatpush1.xpose.msra.mxu0 0.0
    %1022 = vmatprep.subr.mxu0 0.0
    %1023 = vmatpush1.xpose.msra.mxu0 0.0
    %1024 = vmatprep.subr.mxu0 0.0
    %1025 = vmatpush1.xpose.msra.mxu0 0.0
    %1026 = vmatprep.subr.mxu0 0.0
    %1027 = vmatpush1.xpose.msra.mxu0 0.0
    %1028 = vmatprep.subr.mxu0 0.0
    %1029 = vmatpush1.xpose.msra.mxu0 0.0
    %1030 = vmatprep.subr.mxu0 0.0
    %1031 = vmatpush1.xpose.msra.mxu0 0.0
    %1032 = vmatprep.subr.mxu0 0.0
    %1033 = vmatpush1.xpose.msra.mxu0 0.0
    %1034 = vmatprep.subr.mxu0 0.0
    %1035 = vmatpush1.xpose.msra.mxu0 0.0
    %1036 = vmatprep.subr.mxu0 0.0
    %1037 = vmatpush1.xpose.msra.mxu0 0.0
    %1038 = vmatprep.subr.mxu0 0.0
    %1039 = vmatpush1.xpose.msra.mxu0 0.0
    %1040 = vmatprep.subr.mxu0 0.0
    %1041 = vmatpush1.xpose.msra.mxu0 0.0
    %1042 = vmatprep.subr.mxu0 0.0
    %1043 = vmatpush1.xpose.msra.mxu0 0.0
    %1044 = vmatprep.subr.mxu0 0.0
    %1045 = vmatpush1.xpose.msra.mxu0 0.0
    %1046 = vmatprep.subr.mxu0 0.0
    %1047 = vmatpush1.xpose.msra.mxu0 0.0
    %1048 = vmatprep.subr.mxu0 0.0
    %1049 = vmatpush1.xpose.msra.mxu0 0.0
    %1050 = vmatprep.subr.mxu0 0.0
    %1051 = vmatpush1.xpose.msra.mxu0 0.0
    %1052 = vmatprep.subr.mxu0 0.0
    %1053 = vmatpush1.xpose.msra.mxu0 0.0
    %1054 = vmatprep.subr.mxu0 0.0
    %1055 = vmatpush1.xpose.msra.mxu0 0.0
    %1056 = vmatprep.subr.mxu0 0.0
    %1057 = vmatpush1.xpose.msra.mxu0 0.0
    %1058 = vmatprep.subr.mxu0 0.0
    %1059 = vmatpush1.xpose.msra.mxu0 0.0
    %1060 = vmatprep.subr.mxu0 0.0
    %1061 = vmatpush1.xpose.msra.mxu0 0.0
    %1062 = vmatprep.subr.mxu0 0.0
    %1063 = vmatpush1.xpose.msra.mxu0 0.0
    %1064 = vmatprep.subr.mxu0 0.0
    %1065 = vmatpush1.xpose.msra.mxu0 0.0
    %1066 = vmatprep.subr.mxu0 0.0
    %1067 = vmatpush1.xpose.msra.mxu0 0.0
    %1068 = vmatprep.subr.mxu0 0.0
    %1069 = vmatpush1.xpose.msra.mxu0 0.0
    %1070 = vmatprep.subr.mxu0 0.0
    %1071 = vmatpush1.xpose.msra.mxu0 0.0
    %1072 = vmatprep.subr.mxu0 0.0
    %1073 = vmatpush1.xpose.msra.mxu0 0.0
    %1074 = vmatprep.subr.mxu0 0.0
    %1075 = vmatpush1.xpose.msra.mxu0 0.0
    %1076 = vmatprep.subr.mxu0 0.0
    %1077 = vmatpush1.xpose.msra.mxu0 0.0
    %1078 = vmatprep.subr.mxu0 0.0
    %1079 = vmatpush1.xpose.msra.mxu0 0.0
    %1080 = vmatprep.subr.mxu0 0.0
    %1081 = vmatpush1.xpose.msra.mxu0 0.0
    %1082 = vmatprep.mubr.f32.mxu0 0.0
    %1083 = vmatmul.mubr.f32.gmra.mrb[0].mxu0 %v1014
    %v1084 = vpop.f32.mrb[0].mxu0
    %v1085 = vadd.f32 0.0, %v1084
    %v1086 = vpop.f32.mrb[0].mxu0
    %1087 = vdwg.mxu0
    %1089 = vrot.lane.b32.xlu0 %v559, 120
    %v1090 = vpop.permute.xlu0 %1089
    %v1091 = vsel %vm705, %v559, 0
    %v1093 = vsel %vm705, %v1090, 0
    %1095 = vmatprep.subr.mxu0 0.0
    %1096 = vmatpush1.xpose.msra.mxu0 %v1093
    %1097 = vmatprep.subr.mxu0 0.0
    %1098 = vmatpush1.xpose.msra.mxu0 0.0
    %1099 = vmatprep.subr.mxu0 0.0
    %1100 = vmatpush1.xpose.msra.mxu0 0.0
    %1101 = vmatprep.subr.mxu0 0.0
    %1102 = vmatpush1.xpose.msra.mxu0 0.0
    %1103 = vmatprep.subr.mxu0 0.0
    %1104 = vmatpush1.xpose.msra.mxu0 0.0
    %1105 = vmatprep.subr.mxu0 0.0
    %1106 = vmatpush1.xpose.msra.mxu0 0.0
    %1107 = vmatprep.subr.mxu0 0.0
    %1108 = vmatpush1.xpose.msra.mxu0 0.0
    %1109 = vmatprep.subr.mxu0 0.0
    %1110 = vmatpush1.xpose.msra.mxu0 0.0
    %1111 = vmatprep.subr.mxu0 0.0
    %1112 = vmatpush1.xpose.msra.mxu0 0.0
    %1113 = vmatprep.subr.mxu0 0.0
    %1114 = vmatpush1.xpose.msra.mxu0 0.0
    %1115 = vmatprep.subr.mxu0 0.0
    %1116 = vmatpush1.xpose.msra.mxu0 0.0
    %1117 = vmatprep.subr.mxu0 0.0
    %1118 = vmatpush1.xpose.msra.mxu0 0.0
    %1119 = vmatprep.subr.mxu0 0.0
    %1120 = vmatpush1.xpose.msra.mxu0 0.0
    %1121 = vmatprep.subr.mxu0 0.0
    %1122 = vmatpush1.xpose.msra.mxu0 0.0
    %1123 = vmatprep.subr.mxu0 0.0
    %1124 = vmatpush1.xpose.msra.mxu0 0.0
    %1125 = vmatprep.subr.mxu0 0.0
    %1126 = vmatpush1.xpose.msra.mxu0 0.0
    %1127 = vmatprep.subr.mxu0 0.0
    %1128 = vmatpush1.xpose.msra.mxu0 0.0
    %1129 = vmatprep.subr.mxu0 0.0
    %1130 = vmatpush1.xpose.msra.mxu0 0.0
    %1131 = vmatprep.subr.mxu0 0.0
    %1132 = vmatpush1.xpose.msra.mxu0 0.0
    %1133 = vmatprep.subr.mxu0 0.0
    %1134 = vmatpush1.xpose.msra.mxu0 0.0
    %1135 = vmatprep.subr.mxu0 0.0
    %1136 = vmatpush1.xpose.msra.mxu0 0.0
    %1137 = vmatprep.subr.mxu0 0.0
    %1138 = vmatpush1.xpose.msra.mxu0 0.0
    %1139 = vmatprep.subr.mxu0 0.0
    %1140 = vmatpush1.xpose.msra.mxu0 0.0
    %1141 = vmatprep.subr.mxu0 0.0
    %1142 = vmatpush1.xpose.msra.mxu0 0.0
    %1143 = vmatprep.subr.mxu0 0.0
    %1144 = vmatpush1.xpose.msra.mxu0 0.0
    %1145 = vmatprep.subr.mxu0 0.0
    %1146 = vmatpush1.xpose.msra.mxu0 0.0
    %1147 = vmatprep.subr.mxu0 0.0
    %1148 = vmatpush1.xpose.msra.mxu0 0.0
    %1149 = vmatprep.subr.mxu0 0.0
    %1150 = vmatpush1.xpose.msra.mxu0 0.0
    %1151 = vmatprep.subr.mxu0 0.0
    %1152 = vmatpush1.xpose.msra.mxu0 0.0
    %1153 = vmatprep.subr.mxu0 0.0
    %1154 = vmatpush1.xpose.msra.mxu0 0.0
    %1155 = vmatprep.subr.mxu0 0.0
    %1156 = vmatpush1.xpose.msra.mxu0 0.0
    %1157 = vmatprep.subr.mxu0 0.0
    %1158 = vmatpush1.xpose.msra.mxu0 0.0
    %1159 = vmatprep.mubr.f32.mxu0 0.0
    %1160 = vmatmul.mubr.f32.gmra.mrb[0].mxu0 %v1091
    %v1161 = vpop.f32.mrb[0].mxu0
    %v1162 = vadd.f32 0.0, %v1161
    %v1163 = vpop.f32.mrb[0].mxu0
    %1164 = vdwg.mxu0
    %1166 = vrot.lane.b32.xlu0 %v629, 120
    %v1167 = vpop.permute.xlu0 %1166
    %v1168 = vsel %vm705, %v629, 0
    %v1170 = vsel %vm705, %v1167, 0
    %1172 = vmatprep.subr.mxu0 0.0
    %1173 = vmatpush1.xpose.msra.mxu0 %v1170
    %1174 = vmatprep.subr.mxu0 0.0
    %1175 = vmatpush1.xpose.msra.mxu0 0.0
    %1176 = vmatprep.subr.mxu0 0.0
    %1177 = vmatpush1.xpose.msra.mxu0 0.0
    %1178 = vmatprep.subr.mxu0 0.0
    %1179 = vmatpush1.xpose.msra.mxu0 0.0
    %1180 = vmatprep.subr.mxu0 0.0
    %1181 = vmatpush1.xpose.msra.mxu0 0.0
    %1182 = vmatprep.subr.mxu0 0.0
    %1183 = vmatpush1.xpose.msra.mxu0 0.0
    %1184 = vmatprep.subr.mxu0 0.0
    %1185 = vmatpush1.xpose.msra.mxu0 0.0
    %1186 = vmatprep.subr.mxu0 0.0
    %1187 = vmatpush1.xpose.msra.mxu0 0.0
    %1188 = vmatprep.subr.mxu0 0.0
    %1189 = vmatpush1.xpose.msra.mxu0 0.0
    %1190 = vmatprep.subr.mxu0 0.0
    %1191 = vmatpush1.xpose.msra.mxu0 0.0
    %1192 = vmatprep.subr.mxu0 0.0
    %1193 = vmatpush1.xpose.msra.mxu0 0.0
    %1194 = vmatprep.subr.mxu0 0.0
    %1195 = vmatpush1.xpose.msra.mxu0 0.0
    %1196 = vmatprep.subr.mxu0 0.0
    %1197 = vmatpush1.xpose.msra.mxu0 0.0
    %1198 = vmatprep.subr.mxu0 0.0
    %1199 = vmatpush1.xpose.msra.mxu0 0.0
    %1200 = vmatprep.subr.mxu0 0.0
    %1201 = vmatpush1.xpose.msra.mxu0 0.0
    %1202 = vmatprep.subr.mxu0 0.0
    %1203 = vmatpush1.xpose.msra.mxu0 0.0
    %1204 = vmatprep.subr.mxu0 0.0
    %1205 = vmatpush1.xpose.msra.mxu0 0.0
    %1206 = vmatprep.subr.mxu0 0.0
    %1207 = vmatpush1.xpose.msra.mxu0 0.0
    %1208 = vmatprep.subr.mxu0 0.0
    %1209 = vmatpush1.xpose.msra.mxu0 0.0
    %1210 = vmatprep.subr.mxu0 0.0
    %1211 = vmatpush1.xpose.msra.mxu0 0.0
    %1212 = vmatprep.subr.mxu0 0.0
    %1213 = vmatpush1.xpose.msra.mxu0 0.0
    %1214 = vmatprep.subr.mxu0 0.0
    %1215 = vmatpush1.xpose.msra.mxu0 0.0
    %1216 = vmatprep.subr.mxu0 0.0
    %1217 = vmatpush1.xpose.msra.mxu0 0.0
    %1218 = vmatprep.subr.mxu0 0.0
    %1219 = vmatpush1.xpose.msra.mxu0 0.0
    %1220 = vmatprep.subr.mxu0 0.0
    %1221 = vmatpush1.xpose.msra.mxu0 0.0
    %1222 = vmatprep.subr.mxu0 0.0
    %1223 = vmatpush1.xpose.msra.mxu0 0.0
    %1224 = vmatprep.subr.mxu0 0.0
    %1225 = vmatpush1.xpose.msra.mxu0 0.0
    %1226 = vmatprep.subr.mxu0 0.0
    %1227 = vmatpush1.xpose.msra.mxu0 0.0
    %1228 = vmatprep.subr.mxu0 0.0
    %1229 = vmatpush1.xpose.msra.mxu0 0.0
    %1230 = vmatprep.subr.mxu0 0.0
    %1231 = vmatpush1.xpose.msra.mxu0 0.0
    %1232 = vmatprep.subr.mxu0 0.0
    %1233 = vmatpush1.xpose.msra.mxu0 0.0
    %1234 = vmatprep.subr.mxu0 0.0
    %1235 = vmatpush1.xpose.msra.mxu0 0.0
    %1236 = vmatprep.mubr.f32.mxu0 0.0
    %1237 = vmatmul.mubr.f32.gmra.mrb[0].mxu0 %v1168
    %v1238 = vpop.f32.mrb[0].mxu0
    %v1239 = vadd.f32 0.0, %v1238
    %v1240 = vpop.f32.mrb[0].mxu0
    %1241 = vdwg.mxu0
    %1243 = vrot.lane.b32.xlu0 %v699, 120
    %v1244 = vpop.permute.xlu0 %1243
    %v1245 = vsel %vm705, %v699, 0
    %v1247 = vsel %vm705, %v1244, 0
    %1249 = vmatprep.subr.mxu0 0.0
    %1250 = vmatpush1.xpose.msra.mxu0 %v1247
    %1251 = vmatprep.subr.mxu0 0.0
    %1252 = vmatpush1.xpose.msra.mxu0 0.0
    %1253 = vmatprep.subr.mxu0 0.0
    %1254 = vmatpush1.xpose.msra.mxu0 0.0
    %1255 = vmatprep.subr.mxu0 0.0
    %1256 = vmatpush1.xpose.msra.mxu0 0.0
    %1257 = vmatprep.subr.mxu0 0.0
    %1258 = vmatpush1.xpose.msra.mxu0 0.0
    %1259 = vmatprep.subr.mxu0 0.0
    %1260 = vmatpush1.xpose.msra.mxu0 0.0
    %1261 = vmatprep.subr.mxu0 0.0
    %1262 = vmatpush1.xpose.msra.mxu0 0.0
    %1263 = vmatprep.subr.mxu0 0.0
    %1264 = vmatpush1.xpose.msra.mxu0 0.0
    %1265 = vmatprep.subr.mxu0 0.0
    %1266 = vmatpush1.xpose.msra.mxu0 0.0
    %1267 = vmatprep.subr.mxu0 0.0
    %1268 = vmatpush1.xpose.msra.mxu0 0.0
    %1269 = vmatprep.subr.mxu0 0.0
    %1270 = vmatpush1.xpose.msra.mxu0 0.0
    %1271 = vmatprep.subr.mxu0 0.0
    %1272 = vmatpush1.xpose.msra.mxu0 0.0
    %1273 = vmatprep.subr.mxu0 0.0
    %1274 = vmatpush1.xpose.msra.mxu0 0.0
    %1275 = vmatprep.subr.mxu0 0.0
    %1276 = vmatpush1.xpose.msra.mxu0 0.0
    %1277 = vmatprep.subr.mxu0 0.0
    %1278 = vmatpush1.xpose.msra.mxu0 0.0
    %1279 = vmatprep.subr.mxu0 0.0
    %1280 = vmatpush1.xpose.msra.mxu0 0.0
    %1281 = vmatprep.subr.mxu0 0.0
    %1282 = vmatpush1.xpose.msra.mxu0 0.0
    %1283 = vmatprep.subr.mxu0 0.0
    %1284 = vmatpush1.xpose.msra.mxu0 0.0
    %1285 = vmatprep.subr.mxu0 0.0
    %1286 = vmatpush1.xpose.msra.mxu0 0.0
    %1287 = vmatprep.subr.mxu0 0.0
    %1288 = vmatpush1.xpose.msra.mxu0 0.0
    %1289 = vmatprep.subr.mxu0 0.0
    %1290 = vmatpush1.xpose.msra.mxu0 0.0
    %1291 = vmatprep.subr.mxu0 0.0
    %1292 = vmatpush1.xpose.msra.mxu0 0.0
    %1293 = vmatprep.subr.mxu0 0.0
    %1294 = vmatpush1.xpose.msra.mxu0 0.0
    %1295 = vmatprep.subr.mxu0 0.0
    %1296 = vmatpush1.xpose.msra.mxu0 0.0
    %1297 = vmatprep.subr.mxu0 0.0
    %1298 = vmatpush1.xpose.msra.mxu0 0.0
    %1299 = vmatprep.subr.mxu0 0.0
    %1300 = vmatpush1.xpose.msra.mxu0 0.0
    %1301 = vmatprep.subr.mxu0 0.0
    %1302 = vmatpush1.xpose.msra.mxu0 0.0
    %1303 = vmatprep.subr.mxu0 0.0
    %1304 = vmatpush1.xpose.msra.mxu0 0.0
    %1305 = vmatprep.subr.mxu0 0.0
    %1306 = vmatpush1.xpose.msra.mxu0 0.0
    %1307 = vmatprep.subr.mxu0 0.0
    %1308 = vmatpush1.xpose.msra.mxu0 0.0
    %1309 = vmatprep.subr.mxu0 0.0
    %1310 = vmatpush1.xpose.msra.mxu0 0.0
    %1311 = vmatprep.subr.mxu0 0.0
    %1312 = vmatpush1.xpose.msra.mxu0 0.0
    %1313 = vmatprep.mubr.f32.mxu0 0.0
    %1314 = vmatmul.mubr.f32.gmra.mrb[0].mxu0 %v1245
    %v1315 = vpop.f32.mrb[0].mxu0
    %v1316 = vadd.f32 0.0, %v1315
    %v1317 = vpop.f32.mrb[0].mxu0
    %1318 = vdwg.mxu0
    %v1319 = vsel %vm705, %v777, -inf
    %1320 = vmax.xlane.f32.xlu0 %v1319
    %v1321 = vpop.xlane.xlu0 %1320
    %v1322 = vsel %vm705, %v854, -inf
    %1323 = vmax.xlane.f32.xlu0 %v1322
    %v1324 = vpop.xlane.xlu0 %1323
    %v1325 = vsel %vm705, %v931, -inf
    %1326 = vmax.xlane.f32.xlu0 %v1325
    %v1327 = vpop.xlane.xlu0 %1326
    %v1328 = vsel %vm705, %v1008, -inf
    %1329 = vmax.xlane.f32.xlu0 %v1328
    %v1330 = vpop.xlane.xlu0 %1329
    %v1331 = vsel %vm705, %v1085, -inf
    %1332 = vmax.xlane.f32.xlu0 %v1331
    %v1333 = vpop.xlane.xlu0 %1332
    %v1334 = vsel %vm705, %v1162, -inf
    %1335 = vmax.xlane.f32.xlu0 %v1334
    %v1336 = vpop.xlane.xlu0 %1335
    %v1337 = vsel %vm705, %v1239, -inf
    %1338 = vmax.xlane.f32.xlu0 %v1337
    %v1339 = vpop.xlane.xlu0 %1338
    %v1340 = vsel %vm705, %v1316, -inf
    %1341 = vmax.xlane.f32.xlu0 %v1340
    %v1342 = vpop.xlane.xlu0 %1341
    %v1343 = vsub.f32 %v777, %v1321
    %v1344 = vsub.f32 %v854, %v1324
    %v1345 = vsub.f32 %v931, %v1327
    %v1346 = vsub.f32 %v1008, %v1330
    %v1347 = vsub.f32 %v1085, %v1333
    %v1348 = vsub.f32 %v1162, %v1336
    %v1349 = vsub.f32 %v1239, %v1339
    %v1350 = vsub.f32 %v1316, %v1342
    %v1351 = vmul.f32 %v1343, 1.442695
    %v1352 = vpow.pop %v1351
    %v1353 = vmul.f32 %v1344, 1.442695
    %v1354 = vpow.pop %v1353
    %v1355 = vmul.f32 %v1345, 1.442695
    %v1356 = vpow.pop %v1355
    %v1357 = vmul.f32 %v1346, 1.442695
    %v1358 = vpow.pop %v1357
    %v1359 = vmul.f32 %v1347, 1.442695
    %v1360 = vpow.pop %v1359
    %v1361 = vmul.f32 %v1348, 1.442695
    %v1362 = vpow.pop %v1361
    %v1363 = vmul.f32 %v1349, 1.442695
    %v1364 = vpow.pop %v1363
    %v1365 = vmul.f32 %v1350, 1.442695
    %v1366 = vpow.pop %v1365
    %v1367 = vsel %vm705, %v1352, 0.0
    %1368 = vadd.xlane.f32.xlu0 %v1367
    %v1369 = vpop.xlane.xlu0 %1368
    %v1370 = vsel %vm705, %v1354, 0.0
    %1371 = vadd.xlane.f32.xlu0 %v1370
    %v1372 = vpop.xlane.xlu0 %1371
    %v1373 = vsel %vm705, %v1356, 0.0
    %1374 = vadd.xlane.f32.xlu0 %v1373
    %v1375 = vpop.xlane.xlu0 %1374
    %v1376 = vsel %vm705, %v1358, 0.0
    %1377 = vadd.xlane.f32.xlu0 %v1376
    %v1378 = vpop.xlane.xlu0 %1377
    %v1379 = vsel %vm705, %v1360, 0.0
    %1380 = vadd.xlane.f32.xlu0 %v1379
    %v1381 = vpop.xlane.xlu0 %1380
    %v1382 = vsel %vm705, %v1362, 0.0
    %1383 = vadd.xlane.f32.xlu0 %v1382
    %v1384 = vpop.xlane.xlu0 %1383
    %v1385 = vsel %vm705, %v1364, 0.0
    %1386 = vadd.xlane.f32.xlu0 %v1385
    %v1387 = vpop.xlane.xlu0 %1386
    %v1388 = vsel %vm705, %v1366, 0.0
    %1389 = vadd.xlane.f32.xlu0 %v1388
    %v1390 = vpop.xlane.xlu0 %1389
    %v1391 = vrcp.pop %v1369
    %v1392 = vrcp.pop %v1372
    %v1393 = vrcp.pop %v1375
    %v1394 = vrcp.pop %v1378
    %v1395 = vrcp.pop %v1381
    %v1396 = vrcp.pop %v1384
    %v1397 = vrcp.pop %v1387
    %v1398 = vrcp.pop %v1390
    %v1399 = vmul.f32 %v1352, %v1391
    %v1400 = vmul.f32 %v1354, %v1392
    %v1401 = vmul.f32 %v1356, %v1393
    %v1402 = vmul.f32 %v1358, %v1394
    %v1403 = vmul.f32 %v1360, %v1395
    %v1404 = vmul.f32 %v1362, %v1396
    %v1405 = vmul.f32 %v1364, %v1397
    %v1406 = vmul.f32 %v1366, %v1398
    %1407 = vrot.lane.b32.xlu0 %v206, 112
    %v1408 = vpop.permute.xlu0 %1407
    %v1411 = vsel %vm705, %v1399, 0
    %1413 = vmatprep.subr.mxu0 0.0
    %1414 = vmatpush1.msra.mxu0 %v1408
    %1415 = vmatprep.subr.mxu0 0.0
    %1416 = vmatpush1.msra.mxu0 0.0
    %1417 = vmatprep.subr.mxu0 0.0
    %1418 = vmatpush1.msra.mxu0 0.0
    %1419 = vmatprep.subr.mxu0 0.0
    %1420 = vmatpush1.msra.mxu0 0.0
    %1421 = vmatprep.subr.mxu0 0.0
    %1422 = vmatpush1.msra.mxu0 0.0
    %1423 = vmatprep.subr.mxu0 0.0
    %1424 = vmatpush1.msra.mxu0 0.0
    %1425 = vmatprep.subr.mxu0 0.0
    %1426 = vmatpush1.msra.mxu0 0.0
    %1427 = vmatprep.subr.mxu0 0.0
    %1428 = vmatpush1.msra.mxu0 0.0
    %1429 = vmatprep.subr.mxu0 0.0
    %1430 = vmatpush1.msra.mxu0 0.0
    %1431 = vmatprep.subr.mxu0 0.0
    %1432 = vmatpush1.msra.mxu0 0.0
    %1433 = vmatprep.subr.mxu0 0.0
    %1434 = vmatpush1.msra.mxu0 0.0
    %1435 = vmatprep.subr.mxu0 0.0
    %1436 = vmatpush1.msra.mxu0 0.0
    %1437 = vmatprep.subr.mxu0 0.0
    %1438 = vmatpush1.msra.mxu0 0.0
    %1439 = vmatprep.subr.mxu0 0.0
    %1440 = vmatpush1.msra.mxu0 0.0
    %1441 = vmatprep.subr.mxu0 0.0
    %1442 = vmatpush1.msra.mxu0 0.0
    %1443 = vmatprep.subr.mxu0 0.0
    %1444 = vmatpush1.msra.mxu0 0.0
    %1445 = vmatprep.subr.mxu0 0.0
    %1446 = vmatpush1.msra.mxu0 0.0
    %1447 = vmatprep.subr.mxu0 0.0
    %1448 = vmatpush1.msra.mxu0 0.0
    %1449 = vmatprep.subr.mxu0 0.0
    %1450 = vmatpush1.msra.mxu0 0.0
    %1451 = vmatprep.subr.mxu0 0.0
    %1452 = vmatpush1.msra.mxu0 0.0
    %1453 = vmatprep.subr.mxu0 0.0
    %1454 = vmatpush1.msra.mxu0 0.0
    %1455 = vmatprep.subr.mxu0 0.0
    %1456 = vmatpush1.msra.mxu0 0.0
    %1457 = vmatprep.subr.mxu0 0.0
    %1458 = vmatpush1.msra.mxu0 0.0
    %1459 = vmatprep.subr.mxu0 0.0
    %1460 = vmatpush1.msra.mxu0 0.0
    %1461 = vmatprep.subr.mxu0 0.0
    %1462 = vmatpush1.msra.mxu0 0.0
    %1463 = vmatprep.subr.mxu0 0.0
    %1464 = vmatpush1.msra.mxu0 0.0
    %1465 = vmatprep.subr.mxu0 0.0
    %1466 = vmatpush1.msra.mxu0 0.0
    %1467 = vmatprep.subr.mxu0 0.0
    %1468 = vmatpush1.msra.mxu0 0.0
    %1469 = vmatprep.subr.mxu0 0.0
    %1470 = vmatpush1.msra.mxu0 0.0
    %1471 = vmatprep.subr.mxu0 0.0
    %1472 = vmatpush1.msra.mxu0 0.0
    %1473 = vmatprep.subr.mxu0 0.0
    %1474 = vmatpush1.msra.mxu0 0.0
    %1475 = vmatprep.subr.mxu0 0.0
    %1476 = vmatpush1.msra.mxu0 0.0
    %1477 = vmatprep.mubr.f32.mxu0 0.0
    %1478 = vmatmul.mubr.f32.gmra.mrb[0].mxu0 %v1411
    %v1479 = vpop.f32.mrb[0].mxu0
    %v1480 = vadd.f32 0.0, %v1479
    %v1481 = vpop.f32.mrb[0].mxu0
    %1482 = vdwg.mxu0
    %1483 = vrot.lane.b32.xlu0 %v279, 112
    %v1484 = vpop.permute.xlu0 %1483
    %v1487 = vsel %vm705, %v1400, 0
    %1489 = vmatprep.subr.mxu0 0.0
    %1490 = vmatpush1.msra.mxu0 %v1484
    %1491 = vmatprep.subr.mxu0 0.0
    %1492 = vmatpush1.msra.mxu0 0.0
    %1493 = vmatprep.subr.mxu0 0.0
    %1494 = vmatpush1.msra.mxu0 0.0
    %1495 = vmatprep.subr.mxu0 0.0
    %1496 = vmatpush1.msra.mxu0 0.0
    %1497 = vmatprep.subr.mxu0 0.0
    %1498 = vmatpush1.msra.mxu0 0.0
    %1499 = vmatprep.subr.mxu0 0.0
    %1500 = vmatpush1.msra.mxu0 0.0
    %1501 = vmatprep.subr.mxu0 0.0
    %1502 = vmatpush1.msra.mxu0 0.0
    %1503 = vmatprep.subr.mxu0 0.0
    %1504 = vmatpush1.msra.mxu0 0.0
    %1505 = vmatprep.subr.mxu0 0.0
    %1506 = vmatpush1.msra.mxu0 0.0
    %1507 = vmatprep.subr.mxu0 0.0
    %1508 = vmatpush1.msra.mxu0 0.0
    %1509 = vmatprep.subr.mxu0 0.0
    %1510 = vmatpush1.msra.mxu0 0.0
    %1511 = vmatprep.subr.mxu0 0.0
    %1512 = vmatpush1.msra.mxu0 0.0
    %1513 = vmatprep.subr.mxu0 0.0
    %1514 = vmatpush1.msra.mxu0 0.0
    %1515 = vmatprep.subr.mxu0 0.0
    %1516 = vmatpush1.msra.mxu0 0.0
    %1517 = vmatprep.subr.mxu0 0.0
    %1518 = vmatpush1.msra.mxu0 0.0
    %1519 = vmatprep.subr.mxu0 0.0
    %1520 = vmatpush1.msra.mxu0 0.0
    %1521 = vmatprep.subr.mxu0 0.0
    %1522 = vmatpush1.msra.mxu0 0.0
    %1523 = vmatprep.subr.mxu0 0.0
    %1524 = vmatpush1.msra.mxu0 0.0
    %1525 = vmatprep.subr.mxu0 0.0
    %1526 = vmatpush1.msra.mxu0 0.0
    %1527 = vmatprep.subr.mxu0 0.0
    %1528 = vmatpush1.msra.mxu0 0.0
    %1529 = vmatprep.subr.mxu0 0.0
    %1530 = vmatpush1.msra.mxu0 0.0
    %1531 = vmatprep.subr.mxu0 0.0
    %1532 = vmatpush1.msra.mxu0 0.0
    %1533 = vmatprep.subr.mxu0 0.0
    %1534 = vmatpush1.msra.mxu0 0.0
    %1535 = vmatprep.subr.mxu0 0.0
    %1536 = vmatpush1.msra.mxu0 0.0
    %1537 = vmatprep.subr.mxu0 0.0
    %1538 = vmatpush1.msra.mxu0 0.0
    %1539 = vmatprep.subr.mxu0 0.0
    %1540 = vmatpush1.msra.mxu0 0.0
    %1541 = vmatprep.subr.mxu0 0.0
    %1542 = vmatpush1.msra.mxu0 0.0
    %1543 = vmatprep.subr.mxu0 0.0
    %1544 = vmatpush1.msra.mxu0 0.0
    %1545 = vmatprep.subr.mxu0 0.0
    %1546 = vmatpush1.msra.mxu0 0.0
    %1547 = vmatprep.subr.mxu0 0.0
    %1548 = vmatpush1.msra.mxu0 0.0
    %1549 = vmatprep.subr.mxu0 0.0
    %1550 = vmatpush1.msra.mxu0 0.0
    %1551 = vmatprep.subr.mxu0 0.0
    %1552 = vmatpush1.msra.mxu0 0.0
    %1553 = vmatprep.mubr.f32.mxu0 0.0
    %1554 = vmatmul.mubr.f32.gmra.mrb[0].mxu0 %v1487
    %v1555 = vpop.f32.mrb[0].mxu0
    %v1556 = vadd.f32 0.0, %v1555
    %v1557 = vpop.f32.mrb[0].mxu0
    %1558 = vdwg.mxu0
    %1559 = vrot.lane.b32.xlu0 %v349, 112
    %v1560 = vpop.permute.xlu0 %1559
    %v1563 = vsel %vm705, %v1401, 0
    %1565 = vmatprep.subr.mxu0 0.0
    %1566 = vmatpush1.msra.mxu0 %v1560
    %1567 = vmatprep.subr.mxu0 0.0
    %1568 = vmatpush1.msra.mxu0 0.0
    %1569 = vmatprep.subr.mxu0 0.0
    %1570 = vmatpush1.msra.mxu0 0.0
    %1571 = vmatprep.subr.mxu0 0.0
    %1572 = vmatpush1.msra.mxu0 0.0
    %1573 = vmatprep.subr.mxu0 0.0
    %1574 = vmatpush1.msra.mxu0 0.0
    %1575 = vmatprep.subr.mxu0 0.0
    %1576 = vmatpush1.msra.mxu0 0.0
    %1577 = vmatprep.subr.mxu0 0.0
    %1578 = vmatpush1.msra.mxu0 0.0
    %1579 = vmatprep.subr.mxu0 0.0
    %1580 = vmatpush1.msra.mxu0 0.0
    %1581 = vmatprep.subr.mxu0 0.0
    %1582 = vmatpush1.msra.mxu0 0.0
    %1583 = vmatprep.subr.mxu0 0.0
    %1584 = vmatpush1.msra.mxu0 0.0
    %1585 = vmatprep.subr.mxu0 0.0
    %1586 = vmatpush1.msra.mxu0 0.0
    %1587 = vmatprep.subr.mxu0 0.0
    %1588 = vmatpush1.msra.mxu0 0.0
    %1589 = vmatprep.subr.mxu0 0.0
    %1590 = vmatpush1.msra.mxu0 0.0
    %1591 = vmatprep.subr.mxu0 0.0
    %1592 = vmatpush1.msra.mxu0 0.0
    %1593 = vmatprep.subr.mxu0 0.0
    %1594 = vmatpush1.msra.mxu0 0.0
    %1595 = vmatprep.subr.mxu0 0.0
    %1596 = vmatpush1.msra.mxu0 0.0
    %1597 = vmatprep.subr.mxu0 0.0
    %1598 = vmatpush1.msra.mxu0 0.0
    %1599 = vmatprep.subr.mxu0 0.0
    %1600 = vmatpush1.msra.mxu0 0.0
    %1601 = vmatprep.subr.mxu0 0.0
    %1602 = vmatpush1.msra.mxu0 0.0
    %1603 = vmatprep.subr.mxu0 0.0
    %1604 = vmatpush1.msra.mxu0 0.0
    %1605 = vmatprep.subr.mxu0 0.0
    %1606 = vmatpush1.msra.mxu0 0.0
    %1607 = vmatprep.subr.mxu0 0.0
    %1608 = vmatpush1.msra.mxu0 0.0
    %1609 = vmatprep.subr.mxu0 0.0
    %1610 = vmatpush1.msra.mxu0 0.0
    %1611 = vmatprep.subr.mxu0 0.0
    %1612 = vmatpush1.msra.mxu0 0.0
    %1613 = vmatprep.subr.mxu0 0.0
    %1614 = vmatpush1.msra.mxu0 0.0
    %1615 = vmatprep.subr.mxu0 0.0
    %1616 = vmatpush1.msra.mxu0 0.0
    %1617 = vmatprep.subr.mxu0 0.0
    %1618 = vmatpush1.msra.mxu0 0.0
    %1619 = vmatprep.subr.mxu0 0.0
    %1620 = vmatpush1.msra.mxu0 0.0
    %1621 = vmatprep.subr.mxu0 0.0
    %1622 = vmatpush1.msra.mxu0 0.0
    %1623 = vmatprep.subr.mxu0 0.0
    %1624 = vmatpush1.msra.mxu0 0.0
    %1625 = vmatprep.subr.mxu0 0.0
    %1626 = vmatpush1.msra.mxu0 0.0
    %1627 = vmatprep.subr.mxu0 0.0
    %1628 = vmatpush1.msra.mxu0 0.0
    %1629 = vmatprep.mubr.f32.mxu0 0.0
    %1630 = vmatmul.mubr.f32.gmra.mrb[0].mxu0 %v1563
    %v1631 = vpop.f32.mrb[0].mxu0
    %v1632 = vadd.f32 0.0, %v1631
    %v1633 = vpop.f32.mrb[0].mxu0
    %1634 = vdwg.mxu0
    %1635 = vrot.lane.b32.xlu0 %v419, 112
    %v1636 = vpop.permute.xlu0 %1635
    %v1639 = vsel %vm705, %v1402, 0
    %1641 = vmatprep.subr.mxu0 0.0
    %1642 = vmatpush1.msra.mxu0 %v1636
    %1643 = vmatprep.subr.mxu0 0.0
    %1644 = vmatpush1.msra.mxu0 0.0
    %1645 = vmatprep.subr.mxu0 0.0
    %1646 = vmatpush1.msra.mxu0 0.0
    %1647 = vmatprep.subr.mxu0 0.0
    %1648 = vmatpush1.msra.mxu0 0.0
    %1649 = vmatprep.subr.mxu0 0.0
    %1650 = vmatpush1.msra.mxu0 0.0
    %1651 = vmatprep.subr.mxu0 0.0
    %1652 = vmatpush1.msra.mxu0 0.0
    %1653 = vmatprep.subr.mxu0 0.0
    %1654 = vmatpush1.msra.mxu0 0.0
    %1655 = vmatprep.subr.mxu0 0.0
    %1656 = vmatpush1.msra.mxu0 0.0
    %1657 = vmatprep.subr.mxu0 0.0
    %1658 = vmatpush1.msra.mxu0 0.0
    %1659 = vmatprep.subr.mxu0 0.0
    %1660 = vmatpush1.msra.mxu0 0.0
    %1661 = vmatprep.subr.mxu0 0.0
    %1662 = vmatpush1.msra.mxu0 0.0
    %1663 = vmatprep.subr.mxu0 0.0
    %1664 = vmatpush1.msra.mxu0 0.0
    %1665 = vmatprep.subr.mxu0 0.0
    %1666 = vmatpush1.msra.mxu0 0.0
    %1667 = vmatprep.subr.mxu0 0.0
    %1668 = vmatpush1.msra.mxu0 0.0
    %1669 = vmatprep.subr.mxu0 0.0
    %1670 = vmatpush1.msra.mxu0 0.0
    %1671 = vmatprep.subr.mxu0 0.0
    %1672 = vmatpush1.msra.mxu0 0.0
    %1673 = vmatprep.subr.mxu0 0.0
    %1674 = vmatpush1.msra.mxu0 0.0
    %1675 = vmatprep.subr.mxu0 0.0
    %1676 = vmatpush1.msra.mxu0 0.0
    %1677 = vmatprep.subr.mxu0 0.0
    %1678 = vmatpush1.msra.mxu0 0.0
    %1679 = vmatprep.subr.mxu0 0.0
    %1680 = vmatpush1.msra.mxu0 0.0
    %1681 = vmatprep.subr.mxu0 0.0
    %1682 = vmatpush1.msra.mxu0 0.0
    %1683 = vmatprep.subr.mxu0 0.0
    %1684 = vmatpush1.msra.mxu0 0.0
    %1685 = vmatprep.subr.mxu0 0.0
    %1686 = vmatpush1.msra.mxu0 0.0
    %1687 = vmatprep.subr.mxu0 0.0
    %1688 = vmatpush1.msra.mxu0 0.0
    %1689 = vmatprep.subr.mxu0 0.0
    %1690 = vmatpush1.msra.mxu0 0.0
    %1691 = vmatprep.subr.mxu0 0.0
    %1692 = vmatpush1.msra.mxu0 0.0
    %1693 = vmatprep.subr.mxu0 0.0
    %1694 = vmatpush1.msra.mxu0 0.0
    %1695 = vmatprep.subr.mxu0 0.0
    %1696 = vmatpush1.msra.mxu0 0.0
    %1697 = vmatprep.subr.mxu0 0.0
    %1698 = vmatpush1.msra.mxu0 0.0
    %1699 = vmatprep.subr.mxu0 0.0
    %1700 = vmatpush1.msra.mxu0 0.0
    %1701 = vmatprep.subr.mxu0 0.0
    %1702 = vmatpush1.msra.mxu0 0.0
    %1703 = vmatprep.subr.mxu0 0.0
    %1704 = vmatpush1.msra.mxu0 0.0
    %1705 = vmatprep.mubr.f32.mxu0 0.0
    %1706 = vmatmul.mubr.f32.gmra.mrb[0].mxu0 %v1639
    %v1707 = vpop.f32.mrb[0].mxu0
    %v1708 = vadd.f32 0.0, %v1707
    %v1709 = vpop.f32.mrb[0].mxu0
    %1710 = vdwg.mxu0
    %1711 = vrot.lane.b32.xlu0 %v489, 112
    %v1712 = vpop.permute.xlu0 %1711
    %v1715 = vsel %vm705, %v1403, 0
    %1717 = vmatprep.subr.mxu0 0.0
    %1718 = vmatpush1.msra.mxu0 %v1712
    %1719 = vmatprep.subr.mxu0 0.0
    %1720 = vmatpush1.msra.mxu0 0.0
    %1721 = vmatprep.subr.mxu0 0.0
    %1722 = vmatpush1.msra.mxu0 0.0
    %1723 = vmatprep.subr.mxu0 0.0
    %1724 = vmatpush1.msra.mxu0 0.0
    %1725 = vmatprep.subr.mxu0 0.0
    %1726 = vmatpush1.msra.mxu0 0.0
    %1727 = vmatprep.subr.mxu0 0.0
    %1728 = vmatpush1.msra.mxu0 0.0
    %1729 = vmatprep.subr.mxu0 0.0
    %1730 = vmatpush1.msra.mxu0 0.0
    %1731 = vmatprep.subr.mxu0 0.0
    %1732 = vmatpush1.msra.mxu0 0.0
    %1733 = vmatprep.subr.mxu0 0.0
    %1734 = vmatpush1.msra.mxu0 0.0
    %1735 = vmatprep.subr.mxu0 0.0
    %1736 = vmatpush1.msra.mxu0 0.0
    %1737 = vmatprep.subr.mxu0 0.0
    %1738 = vmatpush1.msra.mxu0 0.0
    %1739 = vmatprep.subr.mxu0 0.0
    %1740 = vmatpush1.msra.mxu0 0.0
    %1741 = vmatprep.subr.mxu0 0.0
    %1742 = vmatpush1.msra.mxu0 0.0
    %1743 = vmatprep.subr.mxu0 0.0
    %1744 = vmatpush1.msra.mxu0 0.0
    %1745 = vmatprep.subr.mxu0 0.0
    %1746 = vmatpush1.msra.mxu0 0.0
    %1747 = vmatprep.subr.mxu0 0.0
    %1748 = vmatpush1.msra.mxu0 0.0
    %1749 = vmatprep.subr.mxu0 0.0
    %1750 = vmatpush1.msra.mxu0 0.0
    %1751 = vmatprep.subr.mxu0 0.0
    %1752 = vmatpush1.msra.mxu0 0.0
    %1753 = vmatprep.subr.mxu0 0.0
    %1754 = vmatpush1.msra.mxu0 0.0
    %1755 = vmatprep.subr.mxu0 0.0
    %1756 = vmatpush1.msra.mxu0 0.0
    %1757 = vmatprep.subr.mxu0 0.0
    %1758 = vmatpush1.msra.mxu0 0.0
    %1759 = vmatprep.subr.mxu0 0.0
    %1760 = vmatpush1.msra.mxu0 0.0
    %1761 = vmatprep.subr.mxu0 0.0
    %1762 = vmatpush1.msra.mxu0 0.0
    %1763 = vmatprep.subr.mxu0 0.0
    %1764 = vmatpush1.msra.mxu0 0.0
    %1765 = vmatprep.subr.mxu0 0.0
    %1766 = vmatpush1.msra.mxu0 0.0
    %1767 = vmatprep.subr.mxu0 0.0
    %1768 = vmatpush1.msra.mxu0 0.0
    %1769 = vmatprep.subr.mxu0 0.0
    %1770 = vmatpush1.msra.mxu0 0.0
    %1771 = vmatprep.subr.mxu0 0.0
    %1772 = vmatpush1.msra.mxu0 0.0
    %1773 = vmatprep.subr.mxu0 0.0
    %1774 = vmatpush1.msra.mxu0 0.0
    %1775 = vmatprep.subr.mxu0 0.0
    %1776 = vmatpush1.msra.mxu0 0.0
    %1777 = vmatprep.subr.mxu0 0.0
    %1778 = vmatpush1.msra.mxu0 0.0
    %1779 = vmatprep.subr.mxu0 0.0
    %1780 = vmatpush1.msra.mxu0 0.0
    %1781 = vmatprep.mubr.f32.mxu0 0.0
    %1782 = vmatmul.mubr.f32.gmra.mrb[0].mxu0 %v1715
    %v1783 = vpop.f32.mrb[0].mxu0
    %v1784 = vadd.f32 0.0, %v1783
    %v1785 = vpop.f32.mrb[0].mxu0
    %1786 = vdwg.mxu0
    %1787 = vrot.lane.b32.xlu0 %v559, 112
    %v1788 = vpop.permute.xlu0 %1787
    %v1791 = vsel %vm705, %v1404, 0
    %1793 = vmatprep.subr.mxu0 0.0
    %1794 = vmatpush1.msra.mxu0 %v1788
    %1795 = vmatprep.subr.mxu0 0.0
    %1796 = vmatpush1.msra.mxu0 0.0
    %1797 = vmatprep.subr.mxu0 0.0
    %1798 = vmatpush1.msra.mxu0 0.0
    %1799 = vmatprep.subr.mxu0 0.0
    %1800 = vmatpush1.msra.mxu0 0.0
    %1801 = vmatprep.subr.mxu0 0.0
    %1802 = vmatpush1.msra.mxu0 0.0
    %1803 = vmatprep.subr.mxu0 0.0
    %1804 = vmatpush1.msra.mxu0 0.0
    %1805 = vmatprep.subr.mxu0 0.0
    %1806 = vmatpush1.msra.mxu0 0.0
    %1807 = vmatprep.subr.mxu0 0.0
    %1808 = vmatpush1.msra.mxu0 0.0
    %1809 = vmatprep.subr.mxu0 0.0
    %1810 = vmatpush1.msra.mxu0 0.0
    %1811 = vmatprep.subr.mxu0 0.0
    %1812 = vmatpush1.msra.mxu0 0.0
    %1813 = vmatprep.subr.mxu0 0.0
    %1814 = vmatpush1.msra.mxu0 0.0
    %1815 = vmatprep.subr.mxu0 0.0
    %1816 = vmatpush1.msra.mxu0 0.0
    %1817 = vmatprep.subr.mxu0 0.0
    %1818 = vmatpush1.msra.mxu0 0.0
    %1819 = vmatprep.subr.mxu0 0.0
    %1820 = vmatpush1.msra.mxu0 0.0
    %1821 = vmatprep.subr.mxu0 0.0
    %1822 = vmatpush1.msra.mxu0 0.0
    %1823 = vmatprep.subr.mxu0 0.0
    %1824 = vmatpush1.msra.mxu0 0.0
    %1825 = vmatprep.subr.mxu0 0.0
    %1826 = vmatpush1.msra.mxu0 0.0
    %1827 = vmatprep.subr.mxu0 0.0
    %1828 = vmatpush1.msra.mxu0 0.0
    %1829 = vmatprep.subr.mxu0 0.0
    %1830 = vmatpush1.msra.mxu0 0.0
    %1831 = vmatprep.subr.mxu0 0.0
    %1832 = vmatpush1.msra.mxu0 0.0
    %1833 = vmatprep.subr.mxu0 0.0
    %1834 = vmatpush1.msra.mxu0 0.0
    %1835 = vmatprep.subr.mxu0 0.0
    %1836 = vmatpush1.msra.mxu0 0.0
    %1837 = vmatprep.subr.mxu0 0.0
    %1838 = vmatpush1.msra.mxu0 0.0
    %1839 = vmatprep.subr.mxu0 0.0
    %1840 = vmatpush1.msra.mxu0 0.0
    %1841 = vmatprep.subr.mxu0 0.0
    %1842 = vmatpush1.msra.mxu0 0.0
    %1843 = vmatprep.subr.mxu0 0.0
    %1844 = vmatpush1.msra.mxu0 0.0
    %1845 = vmatprep.subr.mxu0 0.0
    %1846 = vmatpush1.msra.mxu0 0.0
    %1847 = vmatprep.subr.mxu0 0.0
    %1848 = vmatpush1.msra.mxu0 0.0
    %1849 = vmatprep.subr.mxu0 0.0
    %1850 = vmatpush1.msra.mxu0 0.0
    %1851 = vmatprep.subr.mxu0 0.0
    %1852 = vmatpush1.msra.mxu0 0.0
    %1853 = vmatprep.subr.mxu0 0.0
    %1854 = vmatpush1.msra.mxu0 0.0
    %1855 = vmatprep.subr.mxu0 0.0
    %1856 = vmatpush1.msra.mxu0 0.0
    %1857 = vmatprep.mubr.f32.mxu0 0.0
    %1858 = vmatmul.mubr.f32.gmra.mrb[0].mxu0 %v1791
    %v1859 = vpop.f32.mrb[0].mxu0
    %v1860 = vadd.f32 0.0, %v1859
    %v1861 = vpop.f32.mrb[0].mxu0
    %1862 = vdwg.mxu0
    %1863 = vrot.lane.b32.xlu0 %v629, 112
    %v1864 = vpop.permute.xlu0 %1863
    %v1867 = vsel %vm705, %v1405, 0
    %1869 = vmatprep.subr.mxu0 0.0
    %1870 = vmatpush1.msra.mxu0 %v1864
    %1871 = vmatprep.subr.mxu0 0.0
    %1872 = vmatpush1.msra.mxu0 0.0
    %1873 = vmatprep.subr.mxu0 0.0
    %1874 = vmatpush1.msra.mxu0 0.0
    %1875 = vmatprep.subr.mxu0 0.0
    %1876 = vmatpush1.msra.mxu0 0.0
    %1877 = vmatprep.subr.mxu0 0.0
    %1878 = vmatpush1.msra.mxu0 0.0
    %1879 = vmatprep.subr.mxu0 0.0
    %1880 = vmatpush1.msra.mxu0 0.0
    %1881 = vmatprep.subr.mxu0 0.0
    %1882 = vmatpush1.msra.mxu0 0.0
    %1883 = vmatprep.subr.mxu0 0.0
    %1884 = vmatpush1.msra.mxu0 0.0
    %1885 = vmatprep.subr.mxu0 0.0
    %1886 = vmatpush1.msra.mxu0 0.0
    %1887 = vmatprep.subr.mxu0 0.0
    %1888 = vmatpush1.msra.mxu0 0.0
    %1889 = vmatprep.subr.mxu0 0.0
    %1890 = vmatpush1.msra.mxu0 0.0
    %1891 = vmatprep.subr.mxu0 0.0
    %1892 = vmatpush1.msra.mxu0 0.0
    %1893 = vmatprep.subr.mxu0 0.0
    %1894 = vmatpush1.msra.mxu0 0.0
    %1895 = vmatprep.subr.mxu0 0.0
    %1896 = vmatpush1.msra.mxu0 0.0
    %1897 = vmatprep.subr.mxu0 0.0
    %1898 = vmatpush1.msra.mxu0 0.0
    %1899 = vmatprep.subr.mxu0 0.0
    %1900 = vmatpush1.msra.mxu0 0.0
    %1901 = vmatprep.subr.mxu0 0.0
    %1902 = vmatpush1.msra.mxu0 0.0
    %1903 = vmatprep.subr.mxu0 0.0
    %1904 = vmatpush1.msra.mxu0 0.0
    %1905 = vmatprep.subr.mxu0 0.0
    %1906 = vmatpush1.msra.mxu0 0.0
    %1907 = vmatprep.subr.mxu0 0.0
    %1908 = vmatpush1.msra.mxu0 0.0
    %1909 = vmatprep.subr.mxu0 0.0
    %1910 = vmatpush1.msra.mxu0 0.0
    %1911 = vmatprep.subr.mxu0 0.0
    %1912 = vmatpush1.msra.mxu0 0.0
    %1913 = vmatprep.subr.mxu0 0.0
    %1914 = vmatpush1.msra.mxu0 0.0
    %1915 = vmatprep.subr.mxu0 0.0
    %1916 = vmatpush1.msra.mxu0 0.0
    %1917 = vmatprep.subr.mxu0 0.0
    %1918 = vmatpush1.msra.mxu0 0.0
    %1919 = vmatprep.subr.mxu0 0.0
    %1920 = vmatpush1.msra.mxu0 0.0
    %1921 = vmatprep.subr.mxu0 0.0
    %1922 = vmatpush1.msra.mxu0 0.0
    %1923 = vmatprep.subr.mxu0 0.0
    %1924 = vmatpush1.msra.mxu0 0.0
    %1925 = vmatprep.subr.mxu0 0.0
    %1926 = vmatpush1.msra.mxu0 0.0
    %1927 = vmatprep.subr.mxu0 0.0
    %1928 = vmatpush1.msra.mxu0 0.0
    %1929 = vmatprep.subr.mxu0 0.0
    %1930 = vmatpush1.msra.mxu0 0.0
    %1931 = vmatprep.subr.mxu0 0.0
    %1932 = vmatpush1.msra.mxu0 0.0
    %1933 = vmatprep.mubr.f32.mxu0 0.0
    %1934 = vmatmul.mubr.f32.gmra.mrb[0].mxu0 %v1867
    %v1935 = vpop.f32.mrb[0].mxu0
    %v1936 = vadd.f32 0.0, %v1935
    %v1937 = vpop.f32.mrb[0].mxu0
    %1938 = vdwg.mxu0
    %1939 = vrot.lane.b32.xlu0 %v699, 112
    %v1940 = vpop.permute.xlu0 %1939
    %v1943 = vsel %vm705, %v1406, 0
    %1945 = vmatprep.subr.mxu0 0.0
    %1946 = vmatpush1.msra.mxu0 %v1940
    %1947 = vmatprep.subr.mxu0 0.0
    %1948 = vmatpush1.msra.mxu0 0.0
    %1949 = vmatprep.subr.mxu0 0.0
    %1950 = vmatpush1.msra.mxu0 0.0
    %1951 = vmatprep.subr.mxu0 0.0
    %1952 = vmatpush1.msra.mxu0 0.0
    %1953 = vmatprep.subr.mxu0 0.0
    %1954 = vmatpush1.msra.mxu0 0.0
    %1955 = vmatprep.subr.mxu0 0.0
    %1956 = vmatpush1.msra.mxu0 0.0
    %1957 = vmatprep.subr.mxu0 0.0
    %1958 = vmatpush1.msra.mxu0 0.0
    %1959 = vmatprep.subr.mxu0 0.0
    %1960 = vmatpush1.msra.mxu0 0.0
    %1961 = vmatprep.subr.mxu0 0.0
    %1962 = vmatpush1.msra.mxu0 0.0
    %1963 = vmatprep.subr.mxu0 0.0
    %1964 = vmatpush1.msra.mxu0 0.0
    %1965 = vmatprep.subr.mxu0 0.0
    %1966 = vmatpush1.msra.mxu0 0.0
    %1967 = vmatprep.subr.mxu0 0.0
    %1968 = vmatpush1.msra.mxu0 0.0
    %1969 = vmatprep.subr.mxu0 0.0
    %1970 = vmatpush1.msra.mxu0 0.0
    %1971 = vmatprep.subr.mxu0 0.0
    %1972 = vmatpush1.msra.mxu0 0.0
    %1973 = vmatprep.subr.mxu0 0.0
    %1974 = vmatpush1.msra.mxu0 0.0
    %1975 = vmatprep.subr.mxu0 0.0
    %1976 = vmatpush1.msra.mxu0 0.0
    %1977 = vmatprep.subr.mxu0 0.0
    %1978 = vmatpush1.msra.mxu0 0.0
    %1979 = vmatprep.subr.mxu0 0.0
    %1980 = vmatpush1.msra.mxu0 0.0
    %1981 = vmatprep.subr.mxu0 0.0
    %1982 = vmatpush1.msra.mxu0 0.0
    %1983 = vmatprep.subr.mxu0 0.0
    %1984 = vmatpush1.msra.mxu0 0.0
    %1985 = vmatprep.subr.mxu0 0.0
    %1986 = vmatpush1.msra.mxu0 0.0
    %1987 = vmatprep.subr.mxu0 0.0
    %1988 = vmatpush1.msra.mxu0 0.0
    %1989 = vmatprep.subr.mxu0 0.0
    %1990 = vmatpush1.msra.mxu0 0.0
    %1991 = vmatprep.subr.mxu0 0.0
    %1992 = vmatpush1.msra.mxu0 0.0
    %1993 = vmatprep.subr.mxu0 0.0
    %1994 = vmatpush1.msra.mxu0 0.0
    %1995 = vmatprep.subr.mxu0 0.0
    %1996 = vmatpush1.msra.mxu0 0.0
    %1997 = vmatprep.subr.mxu0 0.0
    %1998 = vmatpush1.msra.mxu0 0.0
    %1999 = vmatprep.subr.mxu0 0.0
    %2000 = vmatpush1.msra.mxu0 0.0
    %2001 = vmatprep.subr.mxu0 0.0
    %2002 = vmatpush1.msra.mxu0 0.0
    %2003 = vmatprep.subr.mxu0 0.0
    %2004 = vmatpush1.msra.mxu0 0.0
    %2005 = vmatprep.subr.mxu0 0.0
    %2006 = vmatpush1.msra.mxu0 0.0
    %2007 = vmatprep.subr.mxu0 0.0
    %2008 = vmatpush1.msra.mxu0 0.0
    %2009 = vmatprep.mubr.f32.mxu0 0.0
    %2010 = vmatmul.mubr.f32.gmra.mrb[0].mxu0 %v1943
    %v2011 = vpop.f32.mrb[0].mxu0
    %v2012 = vadd.f32 0.0, %v2011
    %v2013 = vpop.f32.mrb[0].mxu0
    %2014 = vdwg.mxu0
    %v2015 = vld [vmem:[%s3] sm:$0xff]
    %v2016 = vld [vmem:[%s3 + $0x8] sm:$0xff]
    %v2017 = vld [vmem:[%s3 + $0x10] sm:$0xff]
    %v2018 = vld [vmem:[%s3 + $0x18] sm:$0xff]
    %v2019 = vld [vmem:[%s3 + $0x20] sm:$0xff]
    %v2020 = vld [vmem:[%s3 + $0x28] sm:$0xff]
    %v2021 = vld [vmem:[%s3 + $0x30] sm:$0xff]
    %v2022 = vld [vmem:[%s3 + $0x38] sm:$0xff]
    %v2024 = vsel %vm705, %v1480, 0
    %2026 = vmatprep.subr.mxu0 0.0
    %2027 = vmatpush1.msra.mxu0 %v2015
    %2028 = vmatprep.subr.mxu0 0.0
    %2029 = vmatpush1.msra.mxu0 0.0
    %2030 = vmatprep.subr.mxu0 0.0
    %2031 = vmatpush1.msra.mxu0 0.0
    %2032 = vmatprep.subr.mxu0 0.0
    %2033 = vmatpush1.msra.mxu0 0.0
    %2034 = vmatprep.subr.mxu0 0.0
    %2035 = vmatpush1.msra.mxu0 0.0
    %2036 = vmatprep.subr.mxu0 0.0
    %2037 = vmatpush1.msra.mxu0 0.0
    %2038 = vmatprep.subr.mxu0 0.0
    %2039 = vmatpush1.msra.mxu0 0.0
    %2040 = vmatprep.subr.mxu0 0.0
    %2041 = vmatpush1.msra.mxu0 0.0
    %2042 = vmatprep.subr.mxu0 0.0
    %2043 = vmatpush1.msra.mxu0 0.0
    %2044 = vmatprep.subr.mxu0 0.0
    %2045 = vmatpush1.msra.mxu0 0.0
    %2046 = vmatprep.subr.mxu0 0.0
    %2047 = vmatpush1.msra.mxu0 0.0
    %2048 = vmatprep.subr.mxu0 0.0
    %2049 = vmatpush1.msra.mxu0 0.0
    %2050 = vmatprep.subr.mxu0 0.0
    %2051 = vmatpush1.msra.mxu0 0.0
    %2052 = vmatprep.subr.mxu0 0.0
    %2053 = vmatpush1.msra.mxu0 0.0
    %2054 = vmatprep.subr.mxu0 0.0
    %2055 = vmatpush1.msra.mxu0 0.0
    %2056 = vmatprep.subr.mxu0 0.0
    %2057 = vmatpush1.msra.mxu0 0.0
    %2058 = vmatprep.subr.mxu0 0.0
    %2059 = vmatpush1.msra.mxu0 0.0
    %2060 = vmatprep.subr.mxu0 0.0
    %2061 = vmatpush1.msra.mxu0 0.0
    %2062 = vmatprep.subr.mxu0 0.0
    %2063 = vmatpush1.msra.mxu0 0.0
    %2064 = vmatprep.subr.mxu0 0.0
    %2065 = vmatpush1.msra.mxu0 0.0
    %2066 = vmatprep.subr.mxu0 0.0
    %2067 = vmatpush1.msra.mxu0 0.0
    %2068 = vmatprep.subr.mxu0 0.0
    %2069 = vmatpush1.msra.mxu0 0.0
    %2070 = vmatprep.subr.mxu0 0.0
    %2071 = vmatpush1.msra.mxu0 0.0
    %2072 = vmatprep.subr.mxu0 0.0
    %2073 = vmatpush1.msra.mxu0 0.0
    %2074 = vmatprep.subr.mxu0 0.0
    %2075 = vmatpush1.msra.mxu0 0.0
    %2076 = vmatprep.subr.mxu0 0.0
    %2077 = vmatpush1.msra.mxu0 0.0
    %2078 = vmatprep.subr.mxu0 0.0
    %2079 = vmatpush1.msra.mxu0 0.0
    %2080 = vmatprep.subr.mxu0 0.0
    %2081 = vmatpush1.msra.mxu0 0.0
    %2082 = vmatprep.subr.mxu0 0.0
    %2083 = vmatpush1.msra.mxu0 0.0
    %2084 = vmatprep.subr.mxu0 0.0
    %2085 = vmatpush1.msra.mxu0 0.0
    %2086 = vmatprep.subr.mxu0 0.0
    %2087 = vmatpush1.msra.mxu0 0.0
    %2088 = vmatprep.subr.mxu0 0.0
    %2089 = vmatpush1.msra.mxu0 0.0
    %2090 = vmatprep.mubr.f32.mxu0 0.0
    %2091 = vmatmul.mubr.f32.gmra.mrb[0].mxu0 %v2024
    %v2092 = vpop.f32.mrb[0].mxu0
    %v2093 = vadd.f32 0.0, %v2092
    %v2094 = vpop.f32.mrb[0].mxu0
    %2095 = vdwg.mxu0
    %v2097 = vsel %vm705, %v1556, 0
    %2099 = vmatprep.subr.mxu0 0.0
    %2100 = vmatpush1.msra.mxu0 %v2016
    %2101 = vmatprep.subr.mxu0 0.0
    %2102 = vmatpush1.msra.mxu0 0.0
    %2103 = vmatprep.subr.mxu0 0.0
    %2104 = vmatpush1.msra.mxu0 0.0
    %2105 = vmatprep.subr.mxu0 0.0
    %2106 = vmatpush1.msra.mxu0 0.0
    %2107 = vmatprep.subr.mxu0 0.0
    %2108 = vmatpush1.msra.mxu0 0.0
    %2109 = vmatprep.subr.mxu0 0.0
    %2110 = vmatpush1.msra.mxu0 0.0
    %2111 = vmatprep.subr.mxu0 0.0
    %2112 = vmatpush1.msra.mxu0 0.0
    %2113 = vmatprep.subr.mxu0 0.0
    %2114 = vmatpush1.msra.mxu0 0.0
    %2115 = vmatprep.subr.mxu0 0.0
    %2116 = vmatpush1.msra.mxu0 0.0
    %2117 = vmatprep.subr.mxu0 0.0
    %2118 = vmatpush1.msra.mxu0 0.0
    %2119 = vmatprep.subr.mxu0 0.0
    %2120 = vmatpush1.msra.mxu0 0.0
    %2121 = vmatprep.subr.mxu0 0.0
    %2122 = vmatpush1.msra.mxu0 0.0
    %2123 = vmatprep.subr.mxu0 0.0
    %2124 = vmatpush1.msra.mxu0 0.0
    %2125 = vmatprep.subr.mxu0 0.0
    %2126 = vmatpush1.msra.mxu0 0.0
    %2127 = vmatprep.subr.mxu0 0.0
    %2128 = vmatpush1.msra.mxu0 0.0
    %2129 = vmatprep.subr.mxu0 0.0
    %2130 = vmatpush1.msra.mxu0 0.0
    %2131 = vmatprep.subr.mxu0 0.0
    %2132 = vmatpush1.msra.mxu0 0.0
    %2133 = vmatprep.subr.mxu0 0.0
    %2134 = vmatpush1.msra.mxu0 0.0
    %2135 = vmatprep.subr.mxu0 0.0
    %2136 = vmatpush1.msra.mxu0 0.0
    %2137 = vmatprep.subr.mxu0 0.0
    %2138 = vmatpush1.msra.mxu0 0.0
    %2139 = vmatprep.subr.mxu0 0.0
    %2140 = vmatpush1.msra.mxu0 0.0
    %2141 = vmatprep.subr.mxu0 0.0
    %2142 = vmatpush1.msra.mxu0 0.0
    %2143 = vmatprep.subr.mxu0 0.0
    %2144 = vmatpush1.msra.mxu0 0.0
    %2145 = vmatprep.subr.mxu0 0.0
    %2146 = vmatpush1.msra.mxu0 0.0
    %2147 = vmatprep.subr.mxu0 0.0
    %2148 = vmatpush1.msra.mxu0 0.0
    %2149 = vmatprep.subr.mxu0 0.0
    %2150 = vmatpush1.msra.mxu0 0.0
    %2151 = vmatprep.subr.mxu0 0.0
    %2152 = vmatpush1.msra.mxu0 0.0
    %2153 = vmatprep.subr.mxu0 0.0
    %2154 = vmatpush1.msra.mxu0 0.0
    %2155 = vmatprep.subr.mxu0 0.0
    %2156 = vmatpush1.msra.mxu0 0.0
    %2157 = vmatprep.subr.mxu0 0.0
    %2158 = vmatpush1.msra.mxu0 0.0
    %2159 = vmatprep.subr.mxu0 0.0
    %2160 = vmatpush1.msra.mxu0 0.0
    %2161 = vmatprep.subr.mxu0 0.0
    %2162 = vmatpush1.msra.mxu0 0.0
    %2163 = vmatprep.mubr.f32.mxu0 0.0
    %2164 = vmatmul.mubr.f32.gmra.mrb[0].mxu0 %v2097
    %v2165 = vpop.f32.mrb[0].mxu0
    %v2166 = vadd.f32 0.0, %v2165
    %v2167 = vpop.f32.mrb[0].mxu0
    %2168 = vdwg.mxu0
    %v2170 = vsel %vm705, %v1632, 0
    %2172 = vmatprep.subr.mxu0 0.0
    %2173 = vmatpush1.msra.mxu0 %v2017
    %2174 = vmatprep.subr.mxu0 0.0
    %2175 = vmatpush1.msra.mxu0 0.0
    %2176 = vmatprep.subr.mxu0 0.0
    %2177 = vmatpush1.msra.mxu0 0.0
    %2178 = vmatprep.subr.mxu0 0.0
    %2179 = vmatpush1.msra.mxu0 0.0
    %2180 = vmatprep.subr.mxu0 0.0
    %2181 = vmatpush1.msra.mxu0 0.0
    %2182 = vmatprep.subr.mxu0 0.0
    %2183 = vmatpush1.msra.mxu0 0.0
    %2184 = vmatprep.subr.mxu0 0.0
    %2185 = vmatpush1.msra.mxu0 0.0
    %2186 = vmatprep.subr.mxu0 0.0
    %2187 = vmatpush1.msra.mxu0 0.0
    %2188 = vmatprep.subr.mxu0 0.0
    %2189 = vmatpush1.msra.mxu0 0.0
    %2190 = vmatprep.subr.mxu0 0.0
    %2191 = vmatpush1.msra.mxu0 0.0
    %2192 = vmatprep.subr.mxu0 0.0
    %2193 = vmatpush1.msra.mxu0 0.0
    %2194 = vmatprep.subr.mxu0 0.0
    %2195 = vmatpush1.msra.mxu0 0.0
    %2196 = vmatprep.subr.mxu0 0.0
    %2197 = vmatpush1.msra.mxu0 0.0
    %2198 = vmatprep.subr.mxu0 0.0
    %2199 = vmatpush1.msra.mxu0 0.0
    %2200 = vmatprep.subr.mxu0 0.0
    %2201 = vmatpush1.msra.mxu0 0.0
    %2202 = vmatprep.subr.mxu0 0.0
    %2203 = vmatpush1.msra.mxu0 0.0
    %2204 = vmatprep.subr.mxu0 0.0
    %2205 = vmatpush1.msra.mxu0 0.0
    %2206 = vmatprep.subr.mxu0 0.0
    %2207 = vmatpush1.msra.mxu0 0.0
    %2208 = vmatprep.subr.mxu0 0.0
    %2209 = vmatpush1.msra.mxu0 0.0
    %2210 = vmatprep.subr.mxu0 0.0
    %2211 = vmatpush1.msra.mxu0 0.0
    %2212 = vmatprep.subr.mxu0 0.0
    %2213 = vmatpush1.msra.mxu0 0.0
    %2214 = vmatprep.subr.mxu0 0.0
    %2215 = vmatpush1.msra.mxu0 0.0
    %2216 = vmatprep.subr.mxu0 0.0
    %2217 = vmatpush1.msra.mxu0 0.0
    %2218 = vmatprep.subr.mxu0 0.0
    %2219 = vmatpush1.msra.mxu0 0.0
    %2220 = vmatprep.subr.mxu0 0.0
    %2221 = vmatpush1.msra.mxu0 0.0
    %2222 = vmatprep.subr.mxu0 0.0
    %2223 = vmatpush1.msra.mxu0 0.0
    %2224 = vmatprep.subr.mxu0 0.0
    %2225 = vmatpush1.msra.mxu0 0.0
    %2226 = vmatprep.subr.mxu0 0.0
    %2227 = vmatpush1.msra.mxu0 0.0
    %2228 = vmatprep.subr.mxu0 0.0
    %2229 = vmatpush1.msra.mxu0 0.0
    %2230 = vmatprep.subr.mxu0 0.0
    %2231 = vmatpush1.msra.mxu0 0.0
    %2232 = vmatprep.subr.mxu0 0.0
    %2233 = vmatpush1.msra.mxu0 0.0
    %2234 = vmatprep.subr.mxu0 0.0
    %2235 = vmatpush1.msra.mxu0 0.0
    %2236 = vmatprep.mubr.f32.mxu0 0.0
    %2237 = vmatmul.mubr.f32.gmra.mrb[0].mxu0 %v2170
    %v2238 = vpop.f32.mrb[0].mxu0
    %v2239 = vadd.f32 0.0, %v2238
    %v2240 = vpop.f32.mrb[0].mxu0
    %2241 = vdwg.mxu0
    %v2243 = vsel %vm705, %v1708, 0
    %2245 = vmatprep.subr.mxu0 0.0
    %2246 = vmatpush1.msra.mxu0 %v2018
    %2247 = vmatprep.subr.mxu0 0.0
    %2248 = vmatpush1.msra.mxu0 0.0
    %2249 = vmatprep.subr.mxu0 0.0
    %2250 = vmatpush1.msra.mxu0 0.0
    %2251 = vmatprep.subr.mxu0 0.0
    %2252 = vmatpush1.msra.mxu0 0.0
    %2253 = vmatprep.subr.mxu0 0.0
    %2254 = vmatpush1.msra.mxu0 0.0
    %2255 = vmatprep.subr.mxu0 0.0
    %2256 = vmatpush1.msra.mxu0 0.0
    %2257 = vmatprep.subr.mxu0 0.0
    %2258 = vmatpush1.msra.mxu0 0.0
    %2259 = vmatprep.subr.mxu0 0.0
    %2260 = vmatpush1.msra.mxu0 0.0
    %2261 = vmatprep.subr.mxu0 0.0
    %2262 = vmatpush1.msra.mxu0 0.0
    %2263 = vmatprep.subr.mxu0 0.0
    %2264 = vmatpush1.msra.mxu0 0.0
    %2265 = vmatprep.subr.mxu0 0.0
    %2266 = vmatpush1.msra.mxu0 0.0
    %2267 = vmatprep.subr.mxu0 0.0
    %2268 = vmatpush1.msra.mxu0 0.0
    %2269 = vmatprep.subr.mxu0 0.0
    %2270 = vmatpush1.msra.mxu0 0.0
    %2271 = vmatprep.subr.mxu0 0.0
    %2272 = vmatpush1.msra.mxu0 0.0
    %2273 = vmatprep.subr.mxu0 0.0
    %2274 = vmatpush1.msra.mxu0 0.0
    %2275 = vmatprep.subr.mxu0 0.0
    %2276 = vmatpush1.msra.mxu0 0.0
    %2277 = vmatprep.subr.mxu0 0.0
    %2278 = vmatpush1.msra.mxu0 0.0
    %2279 = vmatprep.subr.mxu0 0.0
    %2280 = vmatpush1.msra.mxu0 0.0
    %2281 = vmatprep.subr.mxu0 0.0
    %2282 = vmatpush1.msra.mxu0 0.0
    %2283 = vmatprep.subr.mxu0 0.0
    %2284 = vmatpush1.msra.mxu0 0.0
    %2285 = vmatprep.subr.mxu0 0.0
    %2286 = vmatpush1.msra.mxu0 0.0
    %2287 = vmatprep.subr.mxu0 0.0
    %2288 = vmatpush1.msra.mxu0 0.0
    %2289 = vmatprep.subr.mxu0 0.0
    %2290 = vmatpush1.msra.mxu0 0.0
    %2291 = vmatprep.subr.mxu0 0.0
    %2292 = vmatpush1.msra.mxu0 0.0
    %2293 = vmatprep.subr.mxu0 0.0
    %2294 = vmatpush1.msra.mxu0 0.0
    %2295 = vmatprep.subr.mxu0 0.0
    %2296 = vmatpush1.msra.mxu0 0.0
    %2297 = vmatprep.subr.mxu0 0.0
    %2298 = vmatpush1.msra.mxu0 0.0
    %2299 = vmatprep.subr.mxu0 0.0
    %2300 = vmatpush1.msra.mxu0 0.0
    %2301 = vmatprep.subr.mxu0 0.0
    %2302 = vmatpush1.msra.mxu0 0.0
    %2303 = vmatprep.subr.mxu0 0.0
    %2304 = vmatpush1.msra.mxu0 0.0
    %2305 = vmatprep.subr.mxu0 0.0
    %2306 = vmatpush1.msra.mxu0 0.0
    %2307 = vmatprep.subr.mxu0 0.0
    %2308 = vmatpush1.msra.mxu0 0.0
    %2309 = vmatprep.mubr.f32.mxu0 0.0
    %2310 = vmatmul.mubr.f32.gmra.mrb[0].mxu0 %v2243
    %v2311 = vpop.f32.mrb[0].mxu0
    %v2312 = vadd.f32 0.0, %v2311
    %v2313 = vpop.f32.mrb[0].mxu0
    %2314 = vdwg.mxu0
    %v2316 = vsel %vm705, %v1784, 0
    %2318 = vmatprep.subr.mxu0 0.0
    %2319 = vmatpush1.msra.mxu0 %v2019
    %2320 = vmatprep.subr.mxu0 0.0
    %2321 = vmatpush1.msra.mxu0 0.0
    %2322 = vmatprep.subr.mxu0 0.0
    %2323 = vmatpush1.msra.mxu0 0.0
    %2324 = vmatprep.subr.mxu0 0.0
    %2325 = vmatpush1.msra.mxu0 0.0
    %2326 = vmatprep.subr.mxu0 0.0
    %2327 = vmatpush1.msra.mxu0 0.0
    %2328 = vmatprep.subr.mxu0 0.0
    %2329 = vmatpush1.msra.mxu0 0.0
    %2330 = vmatprep.subr.mxu0 0.0
    %2331 = vmatpush1.msra.mxu0 0.0
    %2332 = vmatprep.subr.mxu0 0.0
    %2333 = vmatpush1.msra.mxu0 0.0
    %2334 = vmatprep.subr.mxu0 0.0
    %2335 = vmatpush1.msra.mxu0 0.0
    %2336 = vmatprep.subr.mxu0 0.0
    %2337 = vmatpush1.msra.mxu0 0.0
    %2338 = vmatprep.subr.mxu0 0.0
    %2339 = vmatpush1.msra.mxu0 0.0
    %2340 = vmatprep.subr.mxu0 0.0
    %2341 = vmatpush1.msra.mxu0 0.0
    %2342 = vmatprep.subr.mxu0 0.0
    %2343 = vmatpush1.msra.mxu0 0.0
    %2344 = vmatprep.subr.mxu0 0.0
    %2345 = vmatpush1.msra.mxu0 0.0
    %2346 = vmatprep.subr.mxu0 0.0
    %2347 = vmatpush1.msra.mxu0 0.0
    %2348 = vmatprep.subr.mxu0 0.0
    %2349 = vmatpush1.msra.mxu0 0.0
    %2350 = vmatprep.subr.mxu0 0.0
    %2351 = vmatpush1.msra.mxu0 0.0
    %2352 = vmatprep.subr.mxu0 0.0
    %2353 = vmatpush1.msra.mxu0 0.0
    %2354 = vmatprep.subr.mxu0 0.0
    %2355 = vmatpush1.msra.mxu0 0.0
    %2356 = vmatprep.subr.mxu0 0.0
    %2357 = vmatpush1.msra.mxu0 0.0
    %2358 = vmatprep.subr.mxu0 0.0
    %2359 = vmatpush1.msra.mxu0 0.0
    %2360 = vmatprep.subr.mxu0 0.0
    %2361 = vmatpush1.msra.mxu0 0.0
    %2362 = vmatprep.subr.mxu0 0.0
    %2363 = vmatpush1.msra.mxu0 0.0
    %2364 = vmatprep.subr.mxu0 0.0
    %2365 = vmatpush1.msra.mxu0 0.0
    %2366 = vmatprep.subr.mxu0 0.0
    %2367 = vmatpush1.msra.mxu0 0.0
    %2368 = vmatprep.subr.mxu0 0.0
    %2369 = vmatpush1.msra.mxu0 0.0
    %2370 = vmatprep.subr.mxu0 0.0
    %2371 = vmatpush1.msra.mxu0 0.0
    %2372 = vmatprep.subr.mxu0 0.0
    %2373 = vmatpush1.msra.mxu0 0.0
    %2374 = vmatprep.subr.mxu0 0.0
    %2375 = vmatpush1.msra.mxu0 0.0
    %2376 = vmatprep.subr.mxu0 0.0
    %2377 = vmatpush1.msra.mxu0 0.0
    %2378 = vmatprep.subr.mxu0 0.0
    %2379 = vmatpush1.msra.mxu0 0.0
    %2380 = vmatprep.subr.mxu0 0.0
    %2381 = vmatpush1.msra.mxu0 0.0
    %2382 = vmatprep.mubr.f32.mxu0 0.0
    %2383 = vmatmul.mubr.f32.gmra.mrb[0].mxu0 %v2316
    %v2384 = vpop.f32.mrb[0].mxu0
    %v2385 = vadd.f32 0.0, %v2384
    %v2386 = vpop.f32.mrb[0].mxu0
    %2387 = vdwg.mxu0
    %v2389 = vsel %vm705, %v1860, 0
    %2391 = vmatprep.subr.mxu0 0.0
    %2392 = vmatpush1.msra.mxu0 %v2020
    %2393 = vmatprep.subr.mxu0 0.0
    %2394 = vmatpush1.msra.mxu0 0.0
    %2395 = vmatprep.subr.mxu0 0.0
    %2396 = vmatpush1.msra.mxu0 0.0
    %2397 = vmatprep.subr.mxu0 0.0
    %2398 = vmatpush1.msra.mxu0 0.0
    %2399 = vmatprep.subr.mxu0 0.0
    %2400 = vmatpush1.msra.mxu0 0.0
    %2401 = vmatprep.subr.mxu0 0.0
    %2402 = vmatpush1.msra.mxu0 0.0
    %2403 = vmatprep.subr.mxu0 0.0
    %2404 = vmatpush1.msra.mxu0 0.0
    %2405 = vmatprep.subr.mxu0 0.0
    %2406 = vmatpush1.msra.mxu0 0.0
    %2407 = vmatprep.subr.mxu0 0.0
    %2408 = vmatpush1.msra.mxu0 0.0
    %2409 = vmatprep.subr.mxu0 0.0
    %2410 = vmatpush1.msra.mxu0 0.0
    %2411 = vmatprep.subr.mxu0 0.0
    %2412 = vmatpush1.msra.mxu0 0.0
    %2413 = vmatprep.subr.mxu0 0.0
    %2414 = vmatpush1.msra.mxu0 0.0
    %2415 = vmatprep.subr.mxu0 0.0
    %2416 = vmatpush1.msra.mxu0 0.0
    %2417 = vmatprep.subr.mxu0 0.0
    %2418 = vmatpush1.msra.mxu0 0.0
    %2419 = vmatprep.subr.mxu0 0.0
    %2420 = vmatpush1.msra.mxu0 0.0
    %2421 = vmatprep.subr.mxu0 0.0
    %2422 = vmatpush1.msra.mxu0 0.0
    %2423 = vmatprep.subr.mxu0 0.0
    %2424 = vmatpush1.msra.mxu0 0.0
    %2425 = vmatprep.subr.mxu0 0.0
    %2426 = vmatpush1.msra.mxu0 0.0
    %2427 = vmatprep.subr.mxu0 0.0
    %2428 = vmatpush1.msra.mxu0 0.0
    %2429 = vmatprep.subr.mxu0 0.0
    %2430 = vmatpush1.msra.mxu0 0.0
    %2431 = vmatprep.subr.mxu0 0.0
    %2432 = vmatpush1.msra.mxu0 0.0
    %2433 = vmatprep.subr.mxu0 0.0
    %2434 = vmatpush1.msra.mxu0 0.0
    %2435 = vmatprep.subr.mxu0 0.0
    %2436 = vmatpush1.msra.mxu0 0.0
    %2437 = vmatprep.subr.mxu0 0.0
    %2438 = vmatpush1.msra.mxu0 0.0
    %2439 = vmatprep.subr.mxu0 0.0
    %2440 = vmatpush1.msra.mxu0 0.0
    %2441 = vmatprep.subr.mxu0 0.0
    %2442 = vmatpush1.msra.mxu0 0.0
    %2443 = vmatprep.subr.mxu0 0.0
    %2444 = vmatpush1.msra.mxu0 0.0
    %2445 = vmatprep.subr.mxu0 0.0
    %2446 = vmatpush1.msra.mxu0 0.0
    %2447 = vmatprep.subr.mxu0 0.0
    %2448 = vmatpush1.msra.mxu0 0.0
    %2449 = vmatprep.subr.mxu0 0.0
    %2450 = vmatpush1.msra.mxu0 0.0
    %2451 = vmatprep.subr.mxu0 0.0
    %2452 = vmatpush1.msra.mxu0 0.0
    %2453 = vmatprep.subr.mxu0 0.0
    %2454 = vmatpush1.msra.mxu0 0.0
    %2455 = vmatprep.mubr.f32.mxu0 0.0
    %2456 = vmatmul.mubr.f32.gmra.mrb[0].mxu0 %v2389
    %v2457 = vpop.f32.mrb[0].mxu0
    %v2458 = vadd.f32 0.0, %v2457
    %v2459 = vpop.f32.mrb[0].mxu0
    %2460 = vdwg.mxu0
    %v2462 = vsel %vm705, %v1936, 0
    %2464 = vmatprep.subr.mxu0 0.0
    %2465 = vmatpush1.msra.mxu0 %v2021
    %2466 = vmatprep.subr.mxu0 0.0
    %2467 = vmatpush1.msra.mxu0 0.0
    %2468 = vmatprep.subr.mxu0 0.0
    %2469 = vmatpush1.msra.mxu0 0.0
    %2470 = vmatprep.subr.mxu0 0.0
    %2471 = vmatpush1.msra.mxu0 0.0
    %2472 = vmatprep.subr.mxu0 0.0
    %2473 = vmatpush1.msra.mxu0 0.0
    %2474 = vmatprep.subr.mxu0 0.0
    %2475 = vmatpush1.msra.mxu0 0.0
    %2476 = vmatprep.subr.mxu0 0.0
    %2477 = vmatpush1.msra.mxu0 0.0
    %2478 = vmatprep.subr.mxu0 0.0
    %2479 = vmatpush1.msra.mxu0 0.0
    %2480 = vmatprep.subr.mxu0 0.0
    %2481 = vmatpush1.msra.mxu0 0.0
    %2482 = vmatprep.subr.mxu0 0.0
    %2483 = vmatpush1.msra.mxu0 0.0
    %2484 = vmatprep.subr.mxu0 0.0
    %2485 = vmatpush1.msra.mxu0 0.0
    %2486 = vmatprep.subr.mxu0 0.0
    %2487 = vmatpush1.msra.mxu0 0.0
    %2488 = vmatprep.subr.mxu0 0.0
    %2489 = vmatpush1.msra.mxu0 0.0
    %2490 = vmatprep.subr.mxu0 0.0
    %2491 = vmatpush1.msra.mxu0 0.0
    %2492 = vmatprep.subr.mxu0 0.0
    %2493 = vmatpush1.msra.mxu0 0.0
    %2494 = vmatprep.subr.mxu0 0.0
    %2495 = vmatpush1.msra.mxu0 0.0
    %2496 = vmatprep.subr.mxu0 0.0
    %2497 = vmatpush1.msra.mxu0 0.0
    %2498 = vmatprep.subr.mxu0 0.0
    %2499 = vmatpush1.msra.mxu0 0.0
    %2500 = vmatprep.subr.mxu0 0.0
    %2501 = vmatpush1.msra.mxu0 0.0
    %2502 = vmatprep.subr.mxu0 0.0
    %2503 = vmatpush1.msra.mxu0 0.0
    %2504 = vmatprep.subr.mxu0 0.0
    %2505 = vmatpush1.msra.mxu0 0.0
    %2506 = vmatprep.subr.mxu0 0.0
    %2507 = vmatpush1.msra.mxu0 0.0
    %2508 = vmatprep.subr.mxu0 0.0
    %2509 = vmatpush1.msra.mxu0 0.0
    %2510 = vmatprep.subr.mxu0 0.0
    %2511 = vmatpush1.msra.mxu0 0.0
    %2512 = vmatprep.subr.mxu0 0.0
    %2513 = vmatpush1.msra.mxu0 0.0
    %2514 = vmatprep.subr.mxu0 0.0
    %2515 = vmatpush1.msra.mxu0 0.0
    %2516 = vmatprep.subr.mxu0 0.0
    %2517 = vmatpush1.msra.mxu0 0.0
    %2518 = vmatprep.subr.mxu0 0.0
    %2519 = vmatpush1.msra.mxu0 0.0
    %2520 = vmatprep.subr.mxu0 0.0
    %2521 = vmatpush1.msra.mxu0 0.0
    %2522 = vmatprep.subr.mxu0 0.0
    %2523 = vmatpush1.msra.mxu0 0.0
    %2524 = vmatprep.subr.mxu0 0.0
    %2525 = vmatpush1.msra.mxu0 0.0
    %2526 = vmatprep.subr.mxu0 0.0
    %2527 = vmatpush1.msra.mxu0 0.0
    %2528 = vmatprep.mubr.f32.mxu0 0.0
    %2529 = vmatmul.mubr.f32.gmra.mrb[0].mxu0 %v2462
    %v2530 = vpop.f32.mrb[0].mxu0
    %v2531 = vadd.f32 0.0, %v2530
    %v2532 = vpop.f32.mrb[0].mxu0
    %2533 = vdwg.mxu0
    %v2535 = vsel %vm705, %v2012, 0
    %2537 = vmatprep.subr.mxu0 0.0
    %2538 = vmatpush1.msra.mxu0 %v2022
    %2539 = vmatprep.subr.mxu0 0.0
    %2540 = vmatpush1.msra.mxu0 0.0
    %2541 = vmatprep.subr.mxu0 0.0
    %2542 = vmatpush1.msra.mxu0 0.0
    %2543 = vmatprep.subr.mxu0 0.0
    %2544 = vmatpush1.msra.mxu0 0.0
    %2545 = vmatprep.subr.mxu0 0.0
    %2546 = vmatpush1.msra.mxu0 0.0
    %2547 = vmatprep.subr.mxu0 0.0
    %2548 = vmatpush1.msra.mxu0 0.0
    %2549 = vmatprep.subr.mxu0 0.0
    %2550 = vmatpush1.msra.mxu0 0.0
    %2551 = vmatprep.subr.mxu0 0.0
    %2552 = vmatpush1.msra.mxu0 0.0
    %2553 = vmatprep.subr.mxu0 0.0
    %2554 = vmatpush1.msra.mxu0 0.0
    %2555 = vmatprep.subr.mxu0 0.0
    %2556 = vmatpush1.msra.mxu0 0.0
    %2557 = vmatprep.subr.mxu0 0.0
    %2558 = vmatpush1.msra.mxu0 0.0
    %2559 = vmatprep.subr.mxu0 0.0
    %2560 = vmatpush1.msra.mxu0 0.0
    %2561 = vmatprep.subr.mxu0 0.0
    %2562 = vmatpush1.msra.mxu0 0.0
    %2563 = vmatprep.subr.mxu0 0.0
    %2564 = vmatpush1.msra.mxu0 0.0
    %2565 = vmatprep.subr.mxu0 0.0
    %2566 = vmatpush1.msra.mxu0 0.0
    %2567 = vmatprep.subr.mxu0 0.0
    %2568 = vmatpush1.msra.mxu0 0.0
    %2569 = vmatprep.subr.mxu0 0.0
    %2570 = vmatpush1.msra.mxu0 0.0
    %2571 = vmatprep.subr.mxu0 0.0
    %2572 = vmatpush1.msra.mxu0 0.0
    %2573 = vmatprep.subr.mxu0 0.0
    %2574 = vmatpush1.msra.mxu0 0.0
    %2575 = vmatprep.subr.mxu0 0.0
    %2576 = vmatpush1.msra.mxu0 0.0
    %2577 = vmatprep.subr.mxu0 0.0
    %2578 = vmatpush1.msra.mxu0 0.0
    %2579 = vmatprep.subr.mxu0 0.0
    %2580 = vmatpush1.msra.mxu0 0.0
    %2581 = vmatprep.subr.mxu0 0.0
    %2582 = vmatpush1.msra.mxu0 0.0
    %2583 = vmatprep.subr.mxu0 0.0
    %2584 = vmatpush1.msra.mxu0 0.0
    %2585 = vmatprep.subr.mxu0 0.0
    %2586 = vmatpush1.msra.mxu0 0.0
    %2587 = vmatprep.subr.mxu0 0.0
    %2588 = vmatpush1.msra.mxu0 0.0
    %2589 = vmatprep.subr.mxu0 0.0
    %2590 = vmatpush1.msra.mxu0 0.0
    %2591 = vmatprep.subr.mxu0 0.0
    %2592 = vmatpush1.msra.mxu0 0.0
    %2593 = vmatprep.subr.mxu0 0.0
    %2594 = vmatpush1.msra.mxu0 0.0
    %2595 = vmatprep.subr.mxu0 0.0
    %2596 = vmatpush1.msra.mxu0 0.0
    %2597 = vmatprep.subr.mxu0 0.0
    %2598 = vmatpush1.msra.mxu0 0.0
    %2599 = vmatprep.subr.mxu0 0.0
    %2600 = vmatpush1.msra.mxu0 0.0
    %2601 = vmatprep.mubr.f32.mxu0 0.0
    %2602 = vmatmul.mubr.f32.gmra.mrb[0].mxu0 %v2535
    %v2603 = vpop.f32.mrb[0].mxu0
    %v2604 = vadd.f32 0.0, %v2603
    %v2605 = vpop.f32.mrb[0].mxu0
    %2606 = vdwg.mxu0
    %v2607 = vsel %vm135, %v2093, 0.0
    %v2608 = vsel %vm135, %v2239, 0.0
    %v2609 = vadd.f32 %v2607, %v2608
    %v2610 = vsel %vm135, %v2385, 0.0
    %v2611 = vadd.f32 %v2609, %v2610
    %v2612 = vsel %vm135, %v2531, 0.0
    %v2613 = vadd.f32 %v2611, %v2612
    %v2614 = vsel %vm135, %v2166, 0.0
    %v2615 = vsel %vm135, %v2312, 0.0
    %v2616 = vadd.f32 %v2614, %v2615
    %v2617 = vsel %vm135, %v2458, 0.0
    %v2618 = vadd.f32 %v2616, %v2617
    %v2619 = vsel %vm135, %v2604, 0.0
    %v2620 = vadd.f32 %v2618, %v2619
    %v2621 = vld [vmem:[%s4] sm:$0x1]
    %v2623 = vlaneseq
    %v2624 = vshrl.u32 %v2623, 7
    %v2625 = vsub.s32 0, %v2624
    %v2626 = vrot.slane %v2621, %v2625
    %v2628 = vadd.f32 %v2613, %v2626
    %v2629 = vadd.f32 %v2620, %v2626
    %v2630 = vadd.f32 %v45, %v2628
    %v2631 = vadd.f32 %v46, %v2629
    %v2632 = vld [vmem:[%s5] sm:$0x1]
    %v2633 = vld [vmem:[%s6] sm:$0x1]
    %v2634 = vsel %vm135, %v2630, 0.0
    %2635 = vadd.xlane.f32.xlu0 %v2634
    %v2636 = vpop.xlane.xlu0 %2635
    %v2637 = vsel %vm135, %v2631, 0.0
    %2638 = vadd.xlane.f32.xlu0 %v2637
    %v2639 = vpop.xlane.xlu0 %2638
    %v2640 = vrcp.pop 32.0
    %v2641 = vmul.f32 %v2636, %v2640
    %v2642 = vmul.f32 %v2639, %v2640
    %v2643 = vsub.f32 %v2630, %v2641
    %v2644 = vsub.f32 %v2631, %v2642
    %v2645 = vmul.f32 %v2643, %v2643
    %v2646 = vmul.f32 %v2644, %v2644
    %v2647 = vsel %vm135, %v2645, 0.0
    %2648 = vadd.xlane.f32.xlu0 %v2647
    %v2649 = vpop.xlane.xlu0 %2648
    %v2650 = vsel %vm135, %v2646, 0.0
    %2651 = vadd.xlane.f32.xlu0 %v2650
    %v2652 = vpop.xlane.xlu0 %2651
    %v2653 = vmul.f32 %v2649, %v2640
    %v2654 = vmul.f32 %v2652, %v2640
    %v2655 = vadd.f32 %v2653, 1e-05
    %v2656 = vadd.f32 %v2654, 1e-05
    %v2657 = vrsqrt.pop %v2655
    %v2658 = vrsqrt.pop %v2656
    %v2659 = vmul.f32 %v2643, %v2657
    %v2660 = vmul.f32 %v2644, %v2658
    %v2662 = vlaneseq
    %v2663 = vshrl.u32 %v2662, 7
    %v2664 = vsub.s32 0, %v2663
    %v2665 = vrot.slane %v2632, %v2664
    %v2667 = vmul.f32 %v2659, %v2665
    %v2668 = vmul.f32 %v2660, %v2665
    %v2670 = vlaneseq
    %v2671 = vshrl.u32 %v2670, 7
    %v2672 = vsub.s32 0, %v2671
    %v2673 = vrot.slane %v2633, %v2672
    %v2675 = vadd.f32 %v2667, %v2673
    %v2676 = vadd.f32 %v2668, %v2673
    %v2677 = vld [vmem:[%s7] sm:$0xff]
    %v2678 = vld [vmem:[%s7 + $0x8] sm:$0xff]
    %v2679 = vld [vmem:[%s7 + $0x10] sm:$0xff]
    %v2680 = vld [vmem:[%s7 + $0x18] sm:$0xff]
    %v2681 = vld [vmem:[%s8] sm:$0x1]
    %v2683 = vlaneseq
    %v2684 = vshrl.u32 %v2683, 7
    %v2685 = vsub.s32 0, %v2684
    %v2686 = vrot.slane %v2681, %v2685
    %v2689 = vsel %vm135, %v2675, 0
    %v2692 = vsel %vm135, %v2676, 0
    %2694 = vmatprep.subr.mxu0 0.0
    %2695 = vmatpush1.msra.mxu0 %v2677
    %2696 = vmatprep.subr.mxu0 0.0
    %2697 = vmatpush1.msra.mxu0 %v2678
    %2698 = vmatprep.subr.mxu0 0.0
    %2699 = vmatpush1.msra.mxu0 %v2679
    %2700 = vmatprep.subr.mxu0 0.0
    %2701 = vmatpush1.msra.mxu0 %v2680
    %2702 = vmatprep.subr.mxu0 0.0
    %2703 = vmatpush1.msra.mxu0 0.0
    %2704 = vmatprep.subr.mxu0 0.0
    %2705 = vmatpush1.msra.mxu0 0.0
    %2706 = vmatprep.subr.mxu0 0.0
    %2707 = vmatpush1.msra.mxu0 0.0
    %2708 = vmatprep.subr.mxu0 0.0
    %2709 = vmatpush1.msra.mxu0 0.0
    %2710 = vmatprep.subr.mxu0 0.0
    %2711 = vmatpush1.msra.mxu0 0.0
    %2712 = vmatprep.subr.mxu0 0.0
    %2713 = vmatpush1.msra.mxu0 0.0
    %2714 = vmatprep.subr.mxu0 0.0
    %2715 = vmatpush1.msra.mxu0 0.0
    %2716 = vmatprep.subr.mxu0 0.0
    %2717 = vmatpush1.msra.mxu0 0.0
    %2718 = vmatprep.subr.mxu0 0.0
    %2719 = vmatpush1.msra.mxu0 0.0
    %2720 = vmatprep.subr.mxu0 0.0
    %2721 = vmatpush1.msra.mxu0 0.0
    %2722 = vmatprep.subr.mxu0 0.0
    %2723 = vmatpush1.msra.mxu0 0.0
    %2724 = vmatprep.subr.mxu0 0.0
    %2725 = vmatpush1.msra.mxu0 0.0
    %2726 = vmatprep.subr.mxu0 0.0
    %2727 = vmatpush1.msra.mxu0 0.0
    %2728 = vmatprep.subr.mxu0 0.0
    %2729 = vmatpush1.msra.mxu0 0.0
    %2730 = vmatprep.subr.mxu0 0.0
    %2731 = vmatpush1.msra.mxu0 0.0
    %2732 = vmatprep.subr.mxu0 0.0
    %2733 = vmatpush1.msra.mxu0 0.0
    %2734 = vmatprep.subr.mxu0 0.0
    %2735 = vmatpush1.msra.mxu0 0.0
    %2736 = vmatprep.subr.mxu0 0.0
    %2737 = vmatpush1.msra.mxu0 0.0
    %2738 = vmatprep.subr.mxu0 0.0
    %2739 = vmatpush1.msra.mxu0 0.0
    %2740 = vmatprep.subr.mxu0 0.0
    %2741 = vmatpush1.msra.mxu0 0.0
    %2742 = vmatprep.subr.mxu0 0.0
    %2743 = vmatpush1.msra.mxu0 0.0
    %2744 = vmatprep.subr.mxu0 0.0
    %2745 = vmatpush1.msra.mxu0 0.0
    %2746 = vmatprep.subr.mxu0 0.0
    %2747 = vmatpush1.msra.mxu0 0.0
    %2748 = vmatprep.subr.mxu0 0.0
    %2749 = vmatpush1.msra.mxu0 0.0
    %2750 = vmatprep.subr.mxu0 0.0
    %2751 = vmatpush1.msra.mxu0 0.0
    %2752 = vmatprep.subr.mxu0 0.0
    %2753 = vmatpush1.msra.mxu0 0.0
    %2754 = vmatprep.subr.mxu0 0.0
    %2755 = vmatpush1.msra.mxu0 0.0
    %2756 = vmatprep.subr.mxu0 0.0
    %2757 = vmatpush1.msra.mxu0 0.0
    %2758 = vmatprep.mubr.f32.mxu0 0.0
    %2759 = vmatmul.mubr.f32.gmra.mrb[0].mxu0 %v2689
    %v2760 = vpop.f32.mrb[0].mxu0
    %v2761 = vadd.f32 %v2686, %v2760
    %v2762 = vpop.f32.mrb[0].mxu0
    %2763 = vmatprep.mubr.f32.mxu0 0.0
    %2764 = vmatmul.mubr.f32.gmra.mrb[0].mxu0 %v2692
    %v2765 = vpop.f32.mrb[0].mxu0
    %v2766 = vadd.f32 %v2686, %v2765
    %v2767 = vpop.f32.mrb[0].mxu0
    %2768 = vdwg.mxu0
    %v2769 = vmax.f32 %v2761, 0.0
    %v2770 = vmax.f32 %v2766, 0.0
    %v2771 = vld [vmem:[%s9] sm:$0xff]
    %v2772 = vld [vmem:[%s9 + $0x8] sm:$0xff]
    %v2773 = vld [vmem:[%s9 + $0x10] sm:$0xff]
    %v2774 = vld [vmem:[%s9 + $0x18] sm:$0xff]
    %v2775 = vld [vmem:[%s9 + $0x20] sm:$0xff]
    %v2776 = vld [vmem:[%s9 + $0x28] sm:$0xff]
    %v2777 = vld [vmem:[%s9 + $0x30] sm:$0xff]
    %v2778 = vld [vmem:[%s9 + $0x38] sm:$0xff]
    %v2779 = vld [vmem:[%s9 + $0x40] sm:$0xff]
    %v2780 = vld [vmem:[%s9 + $0x48] sm:$0xff]
    %v2781 = vld [vmem:[%s9 + $0x50] sm:$0xff]
    %v2782 = vld [vmem:[%s9 + $0x58] sm:$0xff]
    %v2783 = vld [vmem:[%s9 + $0x60] sm:$0xff]
    %v2784 = vld [vmem:[%s9 + $0x68] sm:$0xff]
    %v2785 = vld [vmem:[%s9 + $0x70] sm:$0xff]
    %v2786 = vld [vmem:[%s9 + $0x78] sm:$0xff]
    %v2787 = vld [vmem:[%s10] sm:$0x1]
    %v2789 = vlaneseq
    %v2790 = vshrl.u32 %v2789, 7
    %v2791 = vsub.s32 0, %v2790
    %v2792 = vrot.slane %v2787, %v2791
    %2794 = vmatprep.subr.mxu0 0.0
    %2795 = vmatpush1.msra.mxu0 %v2771
    %2796 = vmatprep.subr.mxu0 0.0
    %2797 = vmatpush1.msra.mxu0 %v2772
    %2798 = vmatprep.subr.mxu0 0.0
    %2799 = vmatpush1.msra.mxu0 %v2773
    %2800 = vmatprep.subr.mxu0 0.0
    %2801 = vmatpush1.msra.mxu0 %v2774
    %2802 = vmatprep.subr.mxu0 0.0
    %2803 = vmatpush1.msra.mxu0 %v2775
    %2804 = vmatprep.subr.mxu0 0.0
    %2805 = vmatpush1.msra.mxu0 %v2776
    %2806 = vmatprep.subr.mxu0 0.0
    %2807 = vmatpush1.msra.mxu0 %v2777
    %2808 = vmatprep.subr.mxu0 0.0
    %2809 = vmatpush1.msra.mxu0 %v2778
    %2810 = vmatprep.subr.mxu0 0.0
    %2811 = vmatpush1.msra.mxu0 %v2779
    %2812 = vmatprep.subr.mxu0 0.0
    %2813 = vmatpush1.msra.mxu0 %v2780
    %2814 = vmatprep.subr.mxu0 0.0
    %2815 = vmatpush1.msra.mxu0 %v2781
    %2816 = vmatprep.subr.mxu0 0.0
    %2817 = vmatpush1.msra.mxu0 %v2782
    %2818 = vmatprep.subr.mxu0 0.0
    %2819 = vmatpush1.msra.mxu0 %v2783
    %2820 = vmatprep.subr.mxu0 0.0
    %2821 = vmatpush1.msra.mxu0 %v2784
    %2822 = vmatprep.subr.mxu0 0.0
    %2823 = vmatpush1.msra.mxu0 %v2785
    %2824 = vmatprep.subr.mxu0 0.0
    %2825 = vmatpush1.msra.mxu0 %v2786
    %2826 = vmatprep.subr.mxu0 0.0
    %2827 = vmatpush1.msra.mxu0 0.0
    %2828 = vmatprep.subr.mxu0 0.0
    %2829 = vmatpush1.msra.mxu0 0.0
    %2830 = vmatprep.subr.mxu0 0.0
    %2831 = vmatpush1.msra.mxu0 0.0
    %2832 = vmatprep.subr.mxu0 0.0
    %2833 = vmatpush1.msra.mxu0 0.0
    %2834 = vmatprep.subr.mxu0 0.0
    %2835 = vmatpush1.msra.mxu0 0.0
    %2836 = vmatprep.subr.mxu0 0.0
    %2837 = vmatpush1.msra.mxu0 0.0
    %2838 = vmatprep.subr.mxu0 0.0
    %2839 = vmatpush1.msra.mxu0 0.0
    %2840 = vmatprep.subr.mxu0 0.0
    %2841 = vmatpush1.msra.mxu0 0.0
    %2842 = vmatprep.subr.mxu0 0.0
    %2843 = vmatpush1.msra.mxu0 0.0
    %2844 = vmatprep.subr.mxu0 0.0
    %2845 = vmatpush1.msra.mxu0 0.0
    %2846 = vmatprep.subr.mxu0 0.0
    %2847 = vmatpush1.msra.mxu0 0.0
    %2848 = vmatprep.subr.mxu0 0.0
    %2849 = vmatpush1.msra.mxu0 0.0
    %2850 = vmatprep.subr.mxu0 0.0
    %2851 = vmatpush1.msra.mxu0 0.0
    %2852 = vmatprep.subr.mxu0 0.0
    %2853 = vmatpush1.msra.mxu0 0.0
    %2854 = vmatprep.subr.mxu0 0.0
    %2855 = vmatpush1.msra.mxu0 0.0
    %2856 = vmatprep.subr.mxu0 0.0
    %2857 = vmatpush1.msra.mxu0 0.0
    %2858 = vmatprep.mubr.f32.mxu0 0.0
    %2859 = vmatmul.mubr.f32.gmra.mrb[0].mxu0 %v2769
    %v2860 = vpop.f32.mrb[0].mxu0
    %v2861 = vadd.f32 %v2792, %v2860
    %v2862 = vpop.f32.mrb[0].mxu0
    %2863 = vmatprep.mubr.f32.mxu0 0.0
    %2864 = vmatmul.mubr.f32.gmra.mrb[0].mxu0 %v2770
    %v2865 = vpop.f32.mrb[0].mxu0
    %v2866 = vadd.f32 %v2792, %v2865
    %v2867 = vpop.f32.mrb[0].mxu0
    %2868 = vdwg.mxu0
    %v2869 = vadd.f32 %v2675, %v2861
    %v2870 = vadd.f32 %v2676, %v2866
    %v2871 = vld [vmem:[%s11] sm:$0x1]
    %v2872 = vld [vmem:[%s12] sm:$0x1]
    %v2873 = vsel %vm135, %v2869, 0.0
    %2874 = vadd.xlane.f32.xlu0 %v2873
    %v2875 = vpop.xlane.xlu0 %2874
    %v2876 = vsel %vm135, %v2870, 0.0
    %2877 = vadd.xlane.f32.xlu0 %v2876
    %v2878 = vpop.xlane.xlu0 %2877
    %v2879 = vmul.f32 %v2875, %v2640
    %v2880 = vmul.f32 %v2878, %v2640
    %v2881 = vsub.f32 %v2869, %v2879
    %v2882 = vsub.f32 %v2870, %v2880
    %v2883 = vmul.f32 %v2881, %v2881
    %v2884 = vmul.f32 %v2882, %v2882
    %v2885 = vsel %vm135, %v2883, 0.0
    %2886 = vadd.xlane.f32.xlu0 %v2885
    %v2887 = vpop.xlane.xlu0 %2886
    %v2888 = vsel %vm135, %v2884, 0.0
    %2889 = vadd.xlane.f32.xlu0 %v2888
    %v2890 = vpop.xlane.xlu0 %2889
    %v2891 = vmul.f32 %v2887, %v2640
    %v2892 = vmul.f32 %v2890, %v2640
    %v2893 = vadd.f32 %v2891, 1e-05
    %v2894 = vadd.f32 %v2892, 1e-05
    %v2895 = vrsqrt.pop %v2893
    %v2896 = vrsqrt.pop %v2894
    %v2897 = vmul.f32 %v2881, %v2895
    %v2898 = vmul.f32 %v2882, %v2896
    %v2900 = vlaneseq
    %v2901 = vshrl.u32 %v2900, 7
    %v2902 = vsub.s32 0, %v2901
    %v2903 = vrot.slane %v2871, %v2902
    %v2905 = vmul.f32 %v2897, %v2903
    %v2906 = vmul.f32 %v2898, %v2903
    %v2908 = vlaneseq
    %v2909 = vshrl.u32 %v2908, 7
    %v2910 = vsub.s32 0, %v2909
    %v2911 = vrot.slane %v2872, %v2910
    %v2913 = vadd.f32 %v2905, %v2911
    %v2914 = vadd.f32 %v2906, %v2911
    %2915 = vst.msk [vmem:[#allocation2] sm:$0xff] %vm135, %v2913
    %2916 = vst.msk [vmem:[#allocation2 + $0x8] sm:$0xff] %vm135, %v2914
    // Predicated region
    $region54: #{tpu_custom_call.1} parent=1 // pred_check
      _
    $region55: #{tpu_custom_call.1} parent=1 // pred_check_branch
      %2918 = sbr.rel (0) target = $region57
    $region56: #{tpu_custom_call.1} parent=1 // pred_region
      %s2920 = ssub.s32 256, 256
      %2921 = vsyncadd [#allocation3], %s2920
      %s2922 = sshll.u32 [#allocation2], 4
      %s2923 = int_to_ptr.vmem [resolvable:$true] %s2922
      %2928 = dma.vmem_to_hbm [thread:$0]  %s2923, 256, %s13, [#allocation3], 128, 128, 8
    $region57: #{tpu_custom_call.1} parent=1 // pred_fallthru
      _
    // Predicated region
    $region58: #{tpu_custom_call.1} parent=1 // pred_check
      _
    $region59: #{tpu_custom_call.1} parent=1 // pred_check_branch
      %2930 = sbr.rel (0) target = $region61
    $region60: #{tpu_custom_call.1} parent=1 // pred_region
      %2931 = dma.done [#allocation3], 256
    $region61: #{tpu_custom_call.1} parent=1 // pred_fallthru
      _
    %2932 = vsyncpa [#allocation3], 1

</llo_original>
